<compile_context>
chip_gen: v7x
topology: tpu7x:2x2x1
jax: 0.10.0
libtpu: 0.0.40
codegen_flags: <defaults>
</compile_context>

<pallas_src>
import functools
import math

import jax
import jax.numpy as jnp
from jax.experimental import pallas as pl
from jax.experimental.pallas import tpu as pltpu

KS = 7                                  # gabor kernel size
PAD = KS // 2                           # padding = kernel_size // 2
NUM_KERNELS = 8
EXPAND_RATIO = 2
NTAP = KS * KS                          # 49 taps
NTAP_PAD = ((NTAP + 7) // 8) * 8        # 56: sublane-aligned contraction dim


def _make_divisible(v, divisor=8):
    return int(math.ceil(v / divisor) * divisor)


# ----------------------------------------------------------------------------
# Pallas kernel: whole GaborBlock forward for Bb batch elements per grid step.
# All activations are (channels, H*W): channels on sublanes, pixels on lanes.
# ----------------------------------------------------------------------------
def _gabor_block_kernel(x_ref, w1_ref, s1_ref, b1_ref, gk_ref, s2_ref, b2_ref,
                        wa1_ref, wa2_ref, w2_ref, s3_ref, b3_ref,
                        o_ref, pad_ref, *, H, W, Bb):
    HW = H * W
    Ch = w1_ref.shape[0]
    S = PAD * W + PAD                   # halo width: max |flat tap offset|

    # Constants / masks hoisted once per grid step (JAX does not CSE broadcasts).
    inv_ch = jnp.full((1, Ch), 1.0 / Ch, jnp.float32)        # channel-mean row
    col = jax.lax.broadcasted_iota(jnp.int32, (1, HW), 1) % W
    col_ok = [jnp.logical_and(col + (dx - PAD) >= 0, col + (dx - PAD) < W)
              for dx in range(KS)]

    # Halo-only zeroing (the interior is overwritten by grey below).  Re-done
    # every grid step, so the kernel stays megacore-safe when the batch axis is
    # split across TensorCores.  Both halos MUST stay exactly S wide.
    pad_ref[:, :S] = jnp.zeros((1, S), jnp.float32)
    pad_ref[:, S + HW:] = jnp.zeros((1, S), jnp.float32)

    for i in range(Bb):                 # static unroll over images in this block
        x2 = x_ref[i]                   # (C, HW)

        # --- Conv2d_BN expand (1x1, no bias) + folded BN + exact GELU --------
        h = jnp.dot(w1_ref[...], x2, preferred_element_type=jnp.float32)  # (Ch, HW)
        h = h * s1_ref[...] + b1_ref[...]
        # TODO(synk): jax.nn.gelu(..., approximate=True) offloads this to the
        # EUP but drifts ~3e-3 from nn.GELU(); kept exact erf for the 5e-3 check.
        h = 0.5 * h * (1.0 + jax.lax.erf(h * (1.0 / math.sqrt(2.0))))

        # --- GaborAttention ---------------------------------------------------
        # grey = channel mean on the MXU (no cross-sublane XLU reduction).
        grey = jnp.dot(inv_ch, h, preferred_element_type=jnp.float32)     # (1, HW)
        pad_ref[:, S:S + HW] = grey

        # 7x7 Gabor bank as ONE MXU matmul: assemble the shifted-window matrix
        # WINS (NTAP_PAD, HW) from the zero-padded flat grey (row validity is
        # handled by the zero halos), one column-mask application per dx
        # (7 rows at a time, dx != PAD), then resp = gk @ WINS.
        blocks = []
        for dx in range(KS):
            rows = jnp.concatenate(
                [pad_ref[:, S + (dy - PAD) * W + (dx - PAD):
                            S + (dy - PAD) * W + (dx - PAD) + HW]
                 for dy in range(KS)], axis=0)                            # (KS, HW)
            if dx != PAD:
                rows = jnp.where(col_ok[dx], rows, 0.0)
            blocks.append(rows)
        blocks.append(jnp.zeros((NTAP_PAD - NTAP, HW), jnp.float32))
        wins = jnp.concatenate(blocks, axis=0)                            # (56, HW)
        # gk_ref is (NK, 56) with taps ordered dx-major (tap = dx*KS + dy).
        resp = jnp.dot(gk_ref[...], wins,
                       preferred_element_type=jnp.float32)                # (NK, HW)

        # attention_net: BN -> Conv1x1 -> ReLU -> Conv1x1 -> Sigmoid
        a = resp * s2_ref[...] + b2_ref[...]
        a = jnp.maximum(jnp.dot(wa1_ref[...], a,
                                preferred_element_type=jnp.float32), 0.0)  # (NK, HW)
        att = jax.nn.sigmoid(jnp.dot(wa2_ref[...], a,
                                     preferred_element_type=jnp.float32))  # (1, HW)

        # --- Conv2d_BN project (1x1, no bias) + folded BN, residual add ------
        pj = jnp.dot(w2_ref[...], h * att, preferred_element_type=jnp.float32)
        o_ref[i] = x2 + (pj * s3_ref[...] + b3_ref[...])


# ----------------------------------------------------------------------------
# Wrapper (free reshapes only — no layout transposes, grid over batch blocks)
# ----------------------------------------------------------------------------
def gabor_block(x_nchw, p, *, images_per_step=None):
    B, C, H, W = x_nchw.shape
    HW = H * W
    x = x_nchw.reshape(B, C, HW).astype(jnp.float32)      # free reshape

    if images_per_step is None:
        # Amortize per-step overhead at small shapes but keep >= 2 grid steps
        # so both v7x TensorCores get work.
        images_per_step = 1 if B <= 2 else 2
    Bb = images_per_step
    assert B % Bb == 0, "batch must be divisible by images_per_step"

    wa2_row = p["wa2"].reshape(1, -1)                     # (1, NK) MXU row

    args = (x, p["w1"], p["s1"], p["b1"], p["gk"], p["s2"], p["b2"],
            p["wa1"], wa2_row, p["w2"], p["s3"], p["b3"])

    def full_spec(a):
        nd = a.ndim
        return pl.BlockSpec(a.shape, lambda b, _nd=nd: (0,) * _nd)

    in_specs = ([pl.BlockSpec((Bb, C, HW), lambda b: (b, 0, 0))] +
                [full_spec(a) for a in args[1:]])

    pad_width = HW + 2 * (PAD * W + PAD)                  # flat grey + 2 halos
    kernel = functools.partial(_gabor_block_kernel, H=H, W=W, Bb=Bb)

    out = pl.pallas_call(
        kernel,
        out_shape=jax.ShapeDtypeStruct((B, C, HW), jnp.float32),
        grid=(B // Bb,),
        in_specs=in_specs,
        out_specs=pl.BlockSpec((Bb, C, HW), lambda b: (b, 0, 0)),
        scratch_shapes=[pltpu.VMEM((1, pad_width), jnp.float32)],
        compiler_params=pltpu.CompilerParams(
            dimension_semantics=("parallel",)),
    )(*args)
    return out.reshape(B, C, H, W)                        # free reshape back


# ----------------------------------------------------------------------------
# Deterministic parameter construction (mirrors module __init__ shapes)
# ----------------------------------------------------------------------------
def make_gabor_bank(num_kernels=NUM_KERNELS, kernel_size=KS,
                    sigma=2.0, lam=3.0, gamma=0.5):
    r = (kernel_size - 1) // 2
    coords = jnp.arange(-r, r + 1, dtype=jnp.float32)
    y, x = jnp.meshgrid(coords, coords, indexing="ij")
    ks = []
    for i in range(num_kernels):
        theta = math.pi * i / num_kernels
        xr = x * math.cos(theta) + y * math.sin(theta)
        yr = -x * math.sin(theta) + y * math.cos(theta)
        g = (jnp.exp(-(xr ** 2 + gamma ** 2 * yr ** 2) / (2.0 * sigma ** 2))
             * jnp.cos(2.0 * math.pi * xr / lam))
        ks.append(g)
    return jnp.stack(ks)                                  # (NK, KS, KS)


def init_params(in_channels, key):
    Ch = _make_divisible(int(in_channels * EXPAND_RATIO), 8)
    NK = NUM_KERNELS
    ks = jax.random.split(key, 10)

    def bn_fold(kg, kb, n):
        # eval-mode BN folded to scale/shift (running_mean=0, running_var=1),
        # stored as (n, 1) columns for the channels-on-sublanes layout.
        gamma = 1.0 + 0.1 * jax.random.normal(kg, (n, 1), jnp.float32)
        beta = 0.1 * jax.random.normal(kb, (n, 1), jnp.float32)
        mean = jnp.zeros((n, 1), jnp.float32)
        var = jnp.ones((n, 1), jnp.float32)
        scale = gamma / jnp.sqrt(var + 1e-5)
        shift = beta - mean * scale
        return scale, shift

    # 1x1 conv weights in native torch (out, in) orientation.
    w1 = 0.3 * jax.random.normal(ks[0], (Ch, in_channels), jnp.float32)
    s1, b1 = bn_fold(ks[1], ks[2], Ch)
    s2, b2 = bn_fold(ks[3], ks[4], NK)
    wa1 = 0.3 * jax.random.normal(ks[5], (NK, NK), jnp.float32)   # (out, in)
    wa2 = 0.3 * jax.random.normal(ks[6], (NK, 1), jnp.float32)    # (in, 1) column
    w2 = 0.3 * jax.random.normal(ks[7], (in_channels, Ch), jnp.float32)
    s3, b3 = bn_fold(ks[8], ks[9], in_channels)

    gab = make_gabor_bank()                                       # (NK, KS, KS)
    # Kernel-side Gabor weights: dx-major tap order (tap = dx*KS + dy) so one
    # column mask covers 7 contiguous WINS rows; padded to 56 taps.
    gk = jnp.transpose(gab, (0, 2, 1)).reshape(NUM_KERNELS, NTAP)
    gk = jnp.pad(gk, ((0, 0), (0, NTAP_PAD - NTAP)))              # (NK, 56)

    return dict(w1=w1, s1=s1, b1=b1, gk=gk, s2=s2, b2=b2, wa1=wa1, wa2=wa2,
                w2=w2, s3=s3, b3=b3, gabor_oihw=gab[:, None, :, :])


# ----------------------------------------------------------------------------
# Pure-JAX reference (PyTorch semantics) for verification
# ----------------------------------------------------------------------------
def reference_forward(x_nchw, p):
    B, C, H, W = x_nchw.shape
    xf = jnp.transpose(x_nchw, (0, 2, 3, 1)).reshape(B, H * W, C)
    h = xf @ p["w1"].T * p["s1"].T + p["b1"].T
    h = 0.5 * h * (1.0 + jax.lax.erf(h / math.sqrt(2.0)))         # exact GELU
    grey = jnp.mean(h, axis=-1).reshape(B, 1, H, W)
    resp = jax.lax.conv_general_dilated(
        grey, p["gabor_oihw"], (1, 1), ((PAD, PAD), (PAD, PAD)),
        dimension_numbers=("NCHW", "OIHW", "NCHW"))
    a = jnp.transpose(resp, (0, 2, 3, 1)).reshape(B, H * W, -1)
    a = a * p["s2"].T + p["b2"].T
    a = jnp.maximum(a @ p["wa1"].T, 0.0)
    att = jax.nn.sigmoid(a @ p["wa2"])
    out = (h * att) @ p["w2"].T * p["s3"].T + p["b3"].T
    y = xf + out
    return jnp.transpose(y.reshape(B, H, W, C), (0, 3, 1, 2))


if __name__ == "__main__":
    B, C, H, W = 2, 4, 16, 16
    key = jax.random.PRNGKey(0)
    kx, kp = jax.random.split(key)
    x = jax.random.normal(kx, (B, C, H, W), jnp.float32)
    params = init_params(C, kp)

    y = gabor_block(x, params)
    jax.block_until_ready(y)

    y_ref = reference_forward(x, params)
    err = float(jnp.max(jnp.abs(y - y_ref)))
    assert y.shape == (B, C, H, W)
    assert jnp.allclose(y, y_ref, atol=5e-3, rtol=5e-3), f"max abs err {err}"

    print("KERNEL_OK")
</pallas_src>

<mosaic_0001>
module attributes {stable_mosaic.version = 11 : i64} {
  func.func @_gabor_block_kernel(%arg0: i32, %arg1: memref<1x4x256xf32, #tpu.memory_space<vmem>>, %arg2: memref<8x4xf32, #tpu.memory_space<vmem>>, %arg3: memref<8x1xf32, #tpu.memory_space<vmem>>, %arg4: memref<8x1xf32, #tpu.memory_space<vmem>>, %arg5: memref<8x56xf32, #tpu.memory_space<vmem>>, %arg6: memref<8x1xf32, #tpu.memory_space<vmem>>, %arg7: memref<8x1xf32, #tpu.memory_space<vmem>>, %arg8: memref<8x8xf32, #tpu.memory_space<vmem>>, %arg9: memref<1x8xf32, #tpu.memory_space<vmem>>, %arg10: memref<4x8xf32, #tpu.memory_space<vmem>>, %arg11: memref<4x1xf32, #tpu.memory_space<vmem>>, %arg12: memref<4x1xf32, #tpu.memory_space<vmem>>, %arg13: memref<1x4x256xf32, #tpu.memory_space<vmem>>, %arg14: memref<1x358xf32, #tpu.memory_space<vmem>>) attributes {dimension_semantics = [#tpu.dimension_semantics<parallel>], iteration_bounds = array<i64: 2>, scalar_prefetch = 0 : i64, scratch_operands = 1 : i64, tpu.core_type = #tpu.core_type<tc>, window_params = [{transform_indices = @transform_0, window_bounds = array<i64: 1, 4, 256>}, {pipeline_mode = #tpu.pipeline_mode<synchronous>, transform_indices = @transform_1, window_bounds = array<i64: 8, 4>}, {pipeline_mode = #tpu.pipeline_mode<synchronous>, transform_indices = @transform_2, window_bounds = array<i64: 8, 1>}, {pipeline_mode = #tpu.pipeline_mode<synchronous>, transform_indices = @transform_3, window_bounds = array<i64: 8, 1>}, {pipeline_mode = #tpu.pipeline_mode<synchronous>, transform_indices = @transform_4, window_bounds = array<i64: 8, 56>}, {pipeline_mode = #tpu.pipeline_mode<synchronous>, transform_indices = @transform_5, window_bounds = array<i64: 8, 1>}, {pipeline_mode = #tpu.pipeline_mode<synchronous>, transform_indices = @transform_6, window_bounds = array<i64: 8, 1>}, {pipeline_mode = #tpu.pipeline_mode<synchronous>, transform_indices = @transform_7, window_bounds = array<i64: 8, 8>}, {pipeline_mode = #tpu.pipeline_mode<synchronous>, transform_indices = @transform_8, window_bounds = array<i64: 1, 8>}, {pipeline_mode = #tpu.pipeline_mode<synchronous>, transform_indices = @transform_9, window_bounds = array<i64: 4, 8>}, {pipeline_mode = #tpu.pipeline_mode<synchronous>, transform_indices = @transform_10, window_bounds = array<i64: 4, 1>}, {pipeline_mode = #tpu.pipeline_mode<synchronous>, transform_indices = @transform_11, window_bounds = array<i64: 4, 1>}, {transform_indices = @transform_12, window_bounds = array<i64: 1, 4, 256>}]} {
    %cst = arith.constant 1.250000e-01 : f32
    %0 = vector.broadcast %cst : f32 to vector<1x8xf32>
    %1 = tpu.iota {dimensions = array<i32: 1>} : vector<1x256xi32>
    %c16_i32 = arith.constant 16 : i32
    %c0_i32 = arith.constant 0 : i32
    %2 = arith.cmpi eq, %c16_i32, %c0_i32 : i32
    %c1_i32 = arith.constant 1 : i32
    %3 = arith.select %2, %c1_i32, %c16_i32 : i32
    %4 = vector.broadcast %3 : i32 to vector<1x256xi32>
    %5 = arith.remsi %1, %4 : vector<1x256xi32>
    %c0_i32_0 = arith.constant 0 : i32
    %6 = vector.broadcast %c0_i32_0 : i32 to vector<1x256xi32>
    %7 = arith.cmpi ne, %5, %6 : vector<1x256xi32>
    %c0_i32_1 = arith.constant 0 : i32
    %8 = vector.broadcast %c0_i32_1 : i32 to vector<1x256xi32>
    %9 = arith.cmpi slt, %5, %8 : vector<1x256xi32>
    %c0_i32_2 = arith.constant 0 : i32
    %10 = arith.cmpi slt, %3, %c0_i32_2 : i32
    %11 = vector.broadcast %10 : i1 to vector<1x256xi1>
    %12 = vector.broadcast %11 : vector<1x256xi1> to vector<1x256xi1>
    %13 = arith.xori %9, %12 : vector<1x256xi1>
    %14 = arith.andi %13, %7 : vector<1x256xi1>
    %15 = vector.broadcast %3 : i32 to vector<1x256xi32>
    %16 = arith.addi %5, %15 : vector<1x256xi32>
    %17 = arith.select %14, %16, %5 : vector<1x256xi1>, vector<1x256xi32>
    %c-3_i32 = arith.constant -3 : i32
    %18 = vector.broadcast %c-3_i32 : i32 to vector<1x256xi32>
    %19 = arith.addi %17, %18 : vector<1x256xi32>
    %c0_i32_3 = arith.constant 0 : i32
    %20 = vector.broadcast %c0_i32_3 : i32 to vector<1x256xi32>
    %21 = arith.cmpi sge, %19, %20 : vector<1x256xi32>
    %c-3_i32_4 = arith.constant -3 : i32
    %22 = vector.broadcast %c-3_i32_4 : i32 to vector<1x256xi32>
    %23 = arith.addi %17, %22 : vector<1x256xi32>
    %c16_i32_5 = arith.constant 16 : i32
    %24 = vector.broadcast %c16_i32_5 : i32 to vector<1x256xi32>
    %25 = arith.cmpi slt, %23, %24 : vector<1x256xi32>
    %26 = arith.andi %21, %25 : vector<1x256xi1>
    %c-2_i32 = arith.constant -2 : i32
    %27 = vector.broadcast %c-2_i32 : i32 to vector<1x256xi32>
    %28 = arith.addi %17, %27 : vector<1x256xi32>
    %c0_i32_6 = arith.constant 0 : i32
    %29 = vector.broadcast %c0_i32_6 : i32 to vector<1x256xi32>
    %30 = arith.cmpi sge, %28, %29 : vector<1x256xi32>
    %c-2_i32_7 = arith.constant -2 : i32
    %31 = vector.broadcast %c-2_i32_7 : i32 to vector<1x256xi32>
    %32 = arith.addi %17, %31 : vector<1x256xi32>
    %c16_i32_8 = arith.constant 16 : i32
    %33 = vector.broadcast %c16_i32_8 : i32 to vector<1x256xi32>
    %34 = arith.cmpi slt, %32, %33 : vector<1x256xi32>
    %35 = arith.andi %30, %34 : vector<1x256xi1>
    %c-1_i32 = arith.constant -1 : i32
    %36 = vector.broadcast %c-1_i32 : i32 to vector<1x256xi32>
    %37 = arith.addi %17, %36 : vector<1x256xi32>
    %c0_i32_9 = arith.constant 0 : i32
    %38 = vector.broadcast %c0_i32_9 : i32 to vector<1x256xi32>
    %39 = arith.cmpi sge, %37, %38 : vector<1x256xi32>
    %c-1_i32_10 = arith.constant -1 : i32
    %40 = vector.broadcast %c-1_i32_10 : i32 to vector<1x256xi32>
    %41 = arith.addi %17, %40 : vector<1x256xi32>
    %c16_i32_11 = arith.constant 16 : i32
    %42 = vector.broadcast %c16_i32_11 : i32 to vector<1x256xi32>
    %43 = arith.cmpi slt, %41, %42 : vector<1x256xi32>
    %44 = arith.andi %39, %43 : vector<1x256xi1>
    %c1_i32_12 = arith.constant 1 : i32
    %45 = vector.broadcast %c1_i32_12 : i32 to vector<1x256xi32>
    %46 = arith.addi %17, %45 : vector<1x256xi32>
    %c0_i32_13 = arith.constant 0 : i32
    %47 = vector.broadcast %c0_i32_13 : i32 to vector<1x256xi32>
    %48 = arith.cmpi sge, %46, %47 : vector<1x256xi32>
    %c1_i32_14 = arith.constant 1 : i32
    %49 = vector.broadcast %c1_i32_14 : i32 to vector<1x256xi32>
    %50 = arith.addi %17, %49 : vector<1x256xi32>
    %c16_i32_15 = arith.constant 16 : i32
    %51 = vector.broadcast %c16_i32_15 : i32 to vector<1x256xi32>
    %52 = arith.cmpi slt, %50, %51 : vector<1x256xi32>
    %53 = arith.andi %48, %52 : vector<1x256xi1>
    %c2_i32 = arith.constant 2 : i32
    %54 = vector.broadcast %c2_i32 : i32 to vector<1x256xi32>
    %55 = arith.addi %17, %54 : vector<1x256xi32>
    %c0_i32_16 = arith.constant 0 : i32
    %56 = vector.broadcast %c0_i32_16 : i32 to vector<1x256xi32>
    %57 = arith.cmpi sge, %55, %56 : vector<1x256xi32>
    %c2_i32_17 = arith.constant 2 : i32
    %58 = vector.broadcast %c2_i32_17 : i32 to vector<1x256xi32>
    %59 = arith.addi %17, %58 : vector<1x256xi32>
    %c16_i32_18 = arith.constant 16 : i32
    %60 = vector.broadcast %c16_i32_18 : i32 to vector<1x256xi32>
    %61 = arith.cmpi slt, %59, %60 : vector<1x256xi32>
    %62 = arith.andi %57, %61 : vector<1x256xi1>
    %c3_i32 = arith.constant 3 : i32
    %63 = vector.broadcast %c3_i32 : i32 to vector<1x256xi32>
    %64 = arith.addi %17, %63 : vector<1x256xi32>
    %c0_i32_19 = arith.constant 0 : i32
    %65 = vector.broadcast %c0_i32_19 : i32 to vector<1x256xi32>
    %66 = arith.cmpi sge, %64, %65 : vector<1x256xi32>
    %c3_i32_20 = arith.constant 3 : i32
    %67 = vector.broadcast %c3_i32_20 : i32 to vector<1x256xi32>
    %68 = arith.addi %17, %67 : vector<1x256xi32>
    %c16_i32_21 = arith.constant 16 : i32
    %69 = vector.broadcast %c16_i32_21 : i32 to vector<1x256xi32>
    %70 = arith.cmpi slt, %68, %69 : vector<1x256xi32>
    %71 = arith.andi %66, %70 : vector<1x256xi1>
    %cst_22 = arith.constant 0.000000e+00 : f32
    %72 = vector.broadcast %cst_22 : f32 to vector<1x51xf32>
    %c0 = arith.constant 0 : index
    %c0_23 = arith.constant 0 : index
    %73 = vector.load %arg14[%c0, %c0_23] : memref<1x358xf32, #tpu.memory_space<vmem>>, vector<1x51xf32>
    tpu.vector_store %arg14[%c0, %c0_23], %72 {strides = array<i32>} : memref<1x358xf32, #tpu.memory_space<vmem>>, vector<1x51xf32>,
    %cst_24 = arith.constant 0.000000e+00 : f32
    %74 = vector.broadcast %cst_24 : f32 to vector<1x51xf32>
    %c0_25 = arith.constant 0 : index
    %c307 = arith.constant 307 : index
    %75 = vector.load %arg14[%c0_25, %c307] : memref<1x358xf32, #tpu.memory_space<vmem>>, vector<1x51xf32>
    tpu.vector_store %arg14[%c0_25, %c307], %74 {strides = array<i32>} : memref<1x358xf32, #tpu.memory_space<vmem>>, vector<1x51xf32>,
    %c0_26 = arith.constant 0 : index
    %c0_27 = arith.constant 0 : index
    %c0_28 = arith.constant 0 : index
    %76 = vector.load %arg1[%c0_26, %c0_27, %c0_28] : memref<1x4x256xf32, #tpu.memory_space<vmem>>, vector<1x4x256xf32>
    %77 = vector.shape_cast %76 : vector<1x4x256xf32> to vector<4x256xf32>
    %c0_29 = arith.constant 0 : index
    %c0_30 = arith.constant 0 : index
    %78 = vector.load %arg2[%c0_29, %c0_30] : memref<8x4xf32, #tpu.memory_space<vmem>>, vector<8x4xf32>
    %cst_31 = arith.constant dense<0.000000e+00> : vector<8x256xf32>
    %79 = tpu.matmul %78, %77, %cst_31 {dimension_numbers = #tpu.dot_dimension_numbers<[1], [0], [0], [1], [0, 0, 1, 1], [], []>} : vector<8x4xf32>, vector<4x256xf32>, vector<8x256xf32> -> vector<8x256xf32>
    %c0_32 = arith.constant 0 : index
    %c0_33 = arith.constant 0 : index
    %80 = vector.load %arg3[%c0_32, %c0_33] : memref<8x1xf32, #tpu.memory_space<vmem>>, vector<8x1xf32>
    %81 = vector.broadcast %80 : vector<8x1xf32> to vector<8x256xf32>
    %82 = arith.mulf %79, %81 : vector<8x256xf32>
    %c0_34 = arith.constant 0 : index
    %c0_35 = arith.constant 0 : index
    %83 = vector.load %arg4[%c0_34, %c0_35] : memref<8x1xf32, #tpu.memory_space<vmem>>, vector<8x1xf32>
    %84 = vector.broadcast %83 : vector<8x1xf32> to vector<8x256xf32>
    %85 = arith.addf %82, %84 : vector<8x256xf32>
    %cst_36 = arith.constant 5.000000e-01 : f32
    %86 = vector.broadcast %cst_36 : f32 to vector<8x256xf32>
    %87 = arith.mulf %86, %85 : vector<8x256xf32>
    %cst_37 = arith.constant 0.707106769 : f32
    %88 = vector.broadcast %cst_37 : f32 to vector<8x256xf32>
    %89 = arith.mulf %85, %88 : vector<8x256xf32>
    %90 = math.erf %89 : vector<8x256xf32>
    %cst_38 = arith.constant 1.000000e+00 : f32
    %91 = vector.broadcast %cst_38 : f32 to vector<8x256xf32>
    %92 = arith.addf %91, %90 : vector<8x256xf32>
    %93 = arith.mulf %87, %92 : vector<8x256xf32>
    %cst_39 = arith.constant dense<0.000000e+00> : vector<1x256xf32>
    %94 = tpu.matmul %0, %93, %cst_39 {dimension_numbers = #tpu.dot_dimension_numbers<[1], [0], [0], [1], [0, 0, 1, 1], [], []>} : vector<1x8xf32>, vector<8x256xf32>, vector<1x256xf32> -> vector<1x256xf32>
    %c0_40 = arith.constant 0 : index
    %c51 = arith.constant 51 : index
    %95 = vector.load %arg14[%c0_40, %c51] : memref<1x358xf32, #tpu.memory_space<vmem>>, vector<1x256xf32>
    tpu.vector_store %arg14[%c0_40, %c51], %94 {strides = array<i32>} : memref<1x358xf32, #tpu.memory_space<vmem>>, vector<1x256xf32>,
    %c0_41 = arith.constant 0 : index
    %c0_42 = arith.constant 0 : index
    %96 = vector.load %arg14[%c0_41, %c0_42] : memref<1x358xf32, #tpu.memory_space<vmem>>, vector<1x256xf32>
    %c0_43 = arith.constant 0 : index
    %c16 = arith.constant 16 : index
    %97 = vector.load %arg14[%c0_43, %c16] : memref<1x358xf32, #tpu.memory_space<vmem>>, vector<1x256xf32>
    %c0_44 = arith.constant 0 : index
    %c32 = arith.constant 32 : index
    %98 = vector.load %arg14[%c0_44, %c32] : memref<1x358xf32, #tpu.memory_space<vmem>>, vector<1x256xf32>
    %c0_45 = arith.constant 0 : index
    %c48 = arith.constant 48 : index
    %99 = vector.load %arg14[%c0_45, %c48] : memref<1x358xf32, #tpu.memory_space<vmem>>, vector<1x256xf32>
    %c0_46 = arith.constant 0 : index
    %c64 = arith.constant 64 : index
    %100 = vector.load %arg14[%c0_46, %c64] : memref<1x358xf32, #tpu.memory_space<vmem>>, vector<1x256xf32>
    %c0_47 = arith.constant 0 : index
    %c80 = arith.constant 80 : index
    %101 = vector.load %arg14[%c0_47, %c80] : memref<1x358xf32, #tpu.memory_space<vmem>>, vector<1x256xf32>
    %c0_48 = arith.constant 0 : index
    %c96 = arith.constant 96 : index
    %102 = vector.load %arg14[%c0_48, %c96] : memref<1x358xf32, #tpu.memory_space<vmem>>, vector<1x256xf32>
    %103 = tpu.concatenate %96, %97, %98, %99, %100, %101, %102 in 0 : vector<1x256xf32>, vector<1x256xf32>, vector<1x256xf32>, vector<1x256xf32>, vector<1x256xf32>, vector<1x256xf32>, vector<1x256xf32> -> vector<7x256xf32>
    %cst_49 = arith.constant 0.000000e+00 : f32
    %104 = vector.shape_cast %26 : vector<1x256xi1> to vector<1x256xi1>
    %105 = vector.broadcast %104 : vector<1x256xi1> to vector<7x256xi1>
    %106 = vector.broadcast %cst_49 : f32 to vector<7x256xf32>
    %107 = arith.select %105, %103, %106 : vector<7x256xi1>, vector<7x256xf32>
    %c0_50 = arith.constant 0 : index
    %c1 = arith.constant 1 : index
    %108 = vector.load %arg14[%c0_50, %c1] : memref<1x358xf32, #tpu.memory_space<vmem>>, vector<1x256xf32>
    %c0_51 = arith.constant 0 : index
    %c17 = arith.constant 17 : index
    %109 = vector.load %arg14[%c0_51, %c17] : memref<1x358xf32, #tpu.memory_space<vmem>>, vector<1x256xf32>
    %c0_52 = arith.constant 0 : index
    %c33 = arith.constant 33 : index
    %110 = vector.load %arg14[%c0_52, %c33] : memref<1x358xf32, #tpu.memory_space<vmem>>, vector<1x256xf32>
    %c0_53 = arith.constant 0 : index
    %c49 = arith.constant 49 : index
    %111 = vector.load %arg14[%c0_53, %c49] : memref<1x358xf32, #tpu.memory_space<vmem>>, vector<1x256xf32>
    %c0_54 = arith.constant 0 : index
    %c65 = arith.constant 65 : index
    %112 = vector.load %arg14[%c0_54, %c65] : memref<1x358xf32, #tpu.memory_space<vmem>>, vector<1x256xf32>
    %c0_55 = arith.constant 0 : index
    %c81 = arith.constant 81 : index
    %113 = vector.load %arg14[%c0_55, %c81] : memref<1x358xf32, #tpu.memory_space<vmem>>, vector<1x256xf32>
    %c0_56 = arith.constant 0 : index
    %c97 = arith.constant 97 : index
    %114 = vector.load %arg14[%c0_56, %c97] : memref<1x358xf32, #tpu.memory_space<vmem>>, vector<1x256xf32>
    %115 = tpu.concatenate %108, %109, %110, %111, %112, %113, %114 in 0 : vector<1x256xf32>, vector<1x256xf32>, vector<1x256xf32>, vector<1x256xf32>, vector<1x256xf32>, vector<1x256xf32>, vector<1x256xf32> -> vector<7x256xf32>
    %cst_57 = arith.constant 0.000000e+00 : f32
    %116 = vector.shape_cast %35 : vector<1x256xi1> to vector<1x256xi1>
    %117 = vector.broadcast %116 : vector<1x256xi1> to vector<7x256xi1>
    %118 = vector.broadcast %cst_57 : f32 to vector<7x256xf32>
    %119 = arith.select %117, %115, %118 : vector<7x256xi1>, vector<7x256xf32>
    %c0_58 = arith.constant 0 : index
    %c2 = arith.constant 2 : index
    %120 = vector.load %arg14[%c0_58, %c2] : memref<1x358xf32, #tpu.memory_space<vmem>>, vector<1x256xf32>
    %c0_59 = arith.constant 0 : index
    %c18 = arith.constant 18 : index
    %121 = vector.load %arg14[%c0_59, %c18] : memref<1x358xf32, #tpu.memory_space<vmem>>, vector<1x256xf32>
    %c0_60 = arith.constant 0 : index
    %c34 = arith.constant 34 : index
    %122 = vector.load %arg14[%c0_60, %c34] : memref<1x358xf32, #tpu.memory_space<vmem>>, vector<1x256xf32>
    %c0_61 = arith.constant 0 : index
    %c50 = arith.constant 50 : index
    %123 = vector.load %arg14[%c0_61, %c50] : memref<1x358xf32, #tpu.memory_space<vmem>>, vector<1x256xf32>
    %c0_62 = arith.constant 0 : index
    %c66 = arith.constant 66 : index
    %124 = vector.load %arg14[%c0_62, %c66] : memref<1x358xf32, #tpu.memory_space<vmem>>, vector<1x256xf32>
    %c0_63 = arith.constant 0 : index
    %c82 = arith.constant 82 : index
    %125 = vector.load %arg14[%c0_63, %c82] : memref<1x358xf32, #tpu.memory_space<vmem>>, vector<1x256xf32>
    %c0_64 = arith.constant 0 : index
    %c98 = arith.constant 98 : index
    %126 = vector.load %arg14[%c0_64, %c98] : memref<1x358xf32, #tpu.memory_space<vmem>>, vector<1x256xf32>
    %127 = tpu.concatenate %120, %121, %122, %123, %124, %125, %126 in 0 : vector<1x256xf32>, vector<1x256xf32>, vector<1x256xf32>, vector<1x256xf32>, vector<1x256xf32>, vector<1x256xf32>, vector<1x256xf32> -> vector<7x256xf32>
    %cst_65 = arith.constant 0.000000e+00 : f32
    %128 = vector.shape_cast %44 : vector<1x256xi1> to vector<1x256xi1>
    %129 = vector.broadcast %128 : vector<1x256xi1> to vector<7x256xi1>
    %130 = vector.broadcast %cst_65 : f32 to vector<7x256xf32>
    %131 = arith.select %129, %127, %130 : vector<7x256xi1>, vector<7x256xf32>
    %c0_66 = arith.constant 0 : index
    %c3 = arith.constant 3 : index
    %132 = vector.load %arg14[%c0_66, %c3] : memref<1x358xf32, #tpu.memory_space<vmem>>, vector<1x256xf32>
    %c0_67 = arith.constant 0 : index
    %c19 = arith.constant 19 : index
    %133 = vector.load %arg14[%c0_67, %c19] : memref<1x358xf32, #tpu.memory_space<vmem>>, vector<1x256xf32>
    %c0_68 = arith.constant 0 : index
    %c35 = arith.constant 35 : index
    %134 = vector.load %arg14[%c0_68, %c35] : memref<1x358xf32, #tpu.memory_space<vmem>>, vector<1x256xf32>
    %c0_69 = arith.constant 0 : index
    %c51_70 = arith.constant 51 : index
    %135 = vector.load %arg14[%c0_69, %c51_70] : memref<1x358xf32, #tpu.memory_space<vmem>>, vector<1x256xf32>
    %c0_71 = arith.constant 0 : index
    %c67 = arith.constant 67 : index
    %136 = vector.load %arg14[%c0_71, %c67] : memref<1x358xf32, #tpu.memory_space<vmem>>, vector<1x256xf32>
    %c0_72 = arith.constant 0 : index
    %c83 = arith.constant 83 : index
    %137 = vector.load %arg14[%c0_72, %c83] : memref<1x358xf32, #tpu.memory_space<vmem>>, vector<1x256xf32>
    %c0_73 = arith.constant 0 : index
    %c99 = arith.constant 99 : index
    %138 = vector.load %arg14[%c0_73, %c99] : memref<1x358xf32, #tpu.memory_space<vmem>>, vector<1x256xf32>
    %139 = tpu.concatenate %132, %133, %134, %135, %136, %137, %138 in 0 : vector<1x256xf32>, vector<1x256xf32>, vector<1x256xf32>, vector<1x256xf32>, vector<1x256xf32>, vector<1x256xf32>, vector<1x256xf32> -> vector<7x256xf32>
    %c0_74 = arith.constant 0 : index
    %c4 = arith.constant 4 : index
    %140 = vector.load %arg14[%c0_74, %c4] : memref<1x358xf32, #tpu.memory_space<vmem>>, vector<1x256xf32>
    %c0_75 = arith.constant 0 : index
    %c20 = arith.constant 20 : index
    %141 = vector.load %arg14[%c0_75, %c20] : memref<1x358xf32, #tpu.memory_space<vmem>>, vector<1x256xf32>
    %c0_76 = arith.constant 0 : index
    %c36 = arith.constant 36 : index
    %142 = vector.load %arg14[%c0_76, %c36] : memref<1x358xf32, #tpu.memory_space<vmem>>, vector<1x256xf32>
    %c0_77 = arith.constant 0 : index
    %c52 = arith.constant 52 : index
    %143 = vector.load %arg14[%c0_77, %c52] : memref<1x358xf32, #tpu.memory_space<vmem>>, vector<1x256xf32>
    %c0_78 = arith.constant 0 : index
    %c68 = arith.constant 68 : index
    %144 = vector.load %arg14[%c0_78, %c68] : memref<1x358xf32, #tpu.memory_space<vmem>>, vector<1x256xf32>
    %c0_79 = arith.constant 0 : index
    %c84 = arith.constant 84 : index
    %145 = vector.load %arg14[%c0_79, %c84] : memref<1x358xf32, #tpu.memory_space<vmem>>, vector<1x256xf32>
    %c0_80 = arith.constant 0 : index
    %c100 = arith.constant 100 : index
    %146 = vector.load %arg14[%c0_80, %c100] : memref<1x358xf32, #tpu.memory_space<vmem>>, vector<1x256xf32>
    %147 = tpu.concatenate %140, %141, %142, %143, %144, %145, %146 in 0 : vector<1x256xf32>, vector<1x256xf32>, vector<1x256xf32>, vector<1x256xf32>, vector<1x256xf32>, vector<1x256xf32>, vector<1x256xf32> -> vector<7x256xf32>
    %cst_81 = arith.constant 0.000000e+00 : f32
    %148 = vector.shape_cast %53 : vector<1x256xi1> to vector<1x256xi1>
    %149 = vector.broadcast %148 : vector<1x256xi1> to vector<7x256xi1>
    %150 = vector.broadcast %cst_81 : f32 to vector<7x256xf32>
    %151 = arith.select %149, %147, %150 : vector<7x256xi1>, vector<7x256xf32>
    %c0_82 = arith.constant 0 : index
    %c5 = arith.constant 5 : index
    %152 = vector.load %arg14[%c0_82, %c5] : memref<1x358xf32, #tpu.memory_space<vmem>>, vector<1x256xf32>
    %c0_83 = arith.constant 0 : index
    %c21 = arith.constant 21 : index
    %153 = vector.load %arg14[%c0_83, %c21] : memref<1x358xf32, #tpu.memory_space<vmem>>, vector<1x256xf32>
    %c0_84 = arith.constant 0 : index
    %c37 = arith.constant 37 : index
    %154 = vector.load %arg14[%c0_84, %c37] : memref<1x358xf32, #tpu.memory_space<vmem>>, vector<1x256xf32>
    %c0_85 = arith.constant 0 : index
    %c53 = arith.constant 53 : index
    %155 = vector.load %arg14[%c0_85, %c53] : memref<1x358xf32, #tpu.memory_space<vmem>>, vector<1x256xf32>
    %c0_86 = arith.constant 0 : index
    %c69 = arith.constant 69 : index
    %156 = vector.load %arg14[%c0_86, %c69] : memref<1x358xf32, #tpu.memory_space<vmem>>, vector<1x256xf32>
    %c0_87 = arith.constant 0 : index
    %c85 = arith.constant 85 : index
    %157 = vector.load %arg14[%c0_87, %c85] : memref<1x358xf32, #tpu.memory_space<vmem>>, vector<1x256xf32>
    %c0_88 = arith.constant 0 : index
    %c101 = arith.constant 101 : index
    %158 = vector.load %arg14[%c0_88, %c101] : memref<1x358xf32, #tpu.memory_space<vmem>>, vector<1x256xf32>
    %159 = tpu.concatenate %152, %153, %154, %155, %156, %157, %158 in 0 : vector<1x256xf32>, vector<1x256xf32>, vector<1x256xf32>, vector<1x256xf32>, vector<1x256xf32>, vector<1x256xf32>, vector<1x256xf32> -> vector<7x256xf32>
    %cst_89 = arith.constant 0.000000e+00 : f32
    %160 = vector.shape_cast %62 : vector<1x256xi1> to vector<1x256xi1>
    %161 = vector.broadcast %160 : vector<1x256xi1> to vector<7x256xi1>
    %162 = vector.broadcast %cst_89 : f32 to vector<7x256xf32>
    %163 = arith.select %161, %159, %162 : vector<7x256xi1>, vector<7x256xf32>
    %c0_90 = arith.constant 0 : index
    %c6 = arith.constant 6 : index
    %164 = vector.load %arg14[%c0_90, %c6] : memref<1x358xf32, #tpu.memory_space<vmem>>, vector<1x256xf32>
    %c0_91 = arith.constant 0 : index
    %c22 = arith.constant 22 : index
    %165 = vector.load %arg14[%c0_91, %c22] : memref<1x358xf32, #tpu.memory_space<vmem>>, vector<1x256xf32>
    %c0_92 = arith.constant 0 : index
    %c38 = arith.constant 38 : index
    %166 = vector.load %arg14[%c0_92, %c38] : memref<1x358xf32, #tpu.memory_space<vmem>>, vector<1x256xf32>
    %c0_93 = arith.constant 0 : index
    %c54 = arith.constant 54 : index
    %167 = vector.load %arg14[%c0_93, %c54] : memref<1x358xf32, #tpu.memory_space<vmem>>, vector<1x256xf32>
    %c0_94 = arith.constant 0 : index
    %c70 = arith.constant 70 : index
    %168 = vector.load %arg14[%c0_94, %c70] : memref<1x358xf32, #tpu.memory_space<vmem>>, vector<1x256xf32>
    %c0_95 = arith.constant 0 : index
    %c86 = arith.constant 86 : index
    %169 = vector.load %arg14[%c0_95, %c86] : memref<1x358xf32, #tpu.memory_space<vmem>>, vector<1x256xf32>
    %c0_96 = arith.constant 0 : index
    %c102 = arith.constant 102 : index
    %170 = vector.load %arg14[%c0_96, %c102] : memref<1x358xf32, #tpu.memory_space<vmem>>, vector<1x256xf32>
    %171 = tpu.concatenate %164, %165, %166, %167, %168, %169, %170 in 0 : vector<1x256xf32>, vector<1x256xf32>, vector<1x256xf32>, vector<1x256xf32>, vector<1x256xf32>, vector<1x256xf32>, vector<1x256xf32> -> vector<7x256xf32>
    %cst_97 = arith.constant 0.000000e+00 : f32
    %172 = vector.shape_cast %71 : vector<1x256xi1> to vector<1x256xi1>
    %173 = vector.broadcast %172 : vector<1x256xi1> to vector<7x256xi1>
    %174 = vector.broadcast %cst_97 : f32 to vector<7x256xf32>
    %175 = arith.select %173, %171, %174 : vector<7x256xi1>, vector<7x256xf32>
    %cst_98 = arith.constant 0.000000e+00 : f32
    %176 = vector.broadcast %cst_98 : f32 to vector<7x256xf32>
    %177 = tpu.concatenate %107, %119, %131, %139, %151, %163, %175, %176 in 0 : vector<7x256xf32>, vector<7x256xf32>, vector<7x256xf32>, vector<7x256xf32>, vector<7x256xf32>, vector<7x256xf32>, vector<7x256xf32>, vector<7x256xf32> -> vector<56x256xf32>
    %c0_99 = arith.constant 0 : index
    %c0_100 = arith.constant 0 : index
    %178 = vector.load %arg5[%c0_99, %c0_100] : memref<8x56xf32, #tpu.memory_space<vmem>>, vector<8x56xf32>
    %cst_101 = arith.constant dense<0.000000e+00> : vector<8x256xf32>
    %179 = tpu.matmul %178, %177, %cst_101 {dimension_numbers = #tpu.dot_dimension_numbers<[1], [0], [0], [1], [0, 0, 1, 1], [], []>} : vector<8x56xf32>, vector<56x256xf32>, vector<8x256xf32> -> vector<8x256xf32>
    %c0_102 = arith.constant 0 : index
    %c0_103 = arith.constant 0 : index
    %180 = vector.load %arg6[%c0_102, %c0_103] : memref<8x1xf32, #tpu.memory_space<vmem>>, vector<8x1xf32>
    %181 = vector.broadcast %180 : vector<8x1xf32> to vector<8x256xf32>
    %182 = arith.mulf %179, %181 : vector<8x256xf32>
    %c0_104 = arith.constant 0 : index
    %c0_105 = arith.constant 0 : index
    %183 = vector.load %arg7[%c0_104, %c0_105] : memref<8x1xf32, #tpu.memory_space<vmem>>, vector<8x1xf32>
    %184 = vector.broadcast %183 : vector<8x1xf32> to vector<8x256xf32>
    %185 = arith.addf %182, %184 : vector<8x256xf32>
    %c0_106 = arith.constant 0 : index
    %c0_107 = arith.constant 0 : index
    %186 = vector.load %arg8[%c0_106, %c0_107] : memref<8x8xf32, #tpu.memory_space<vmem>>, vector<8x8xf32>
    %cst_108 = arith.constant dense<0.000000e+00> : vector<8x256xf32>
    %187 = tpu.matmul %186, %185, %cst_108 {dimension_numbers = #tpu.dot_dimension_numbers<[1], [0], [0], [1], [0, 0, 1, 1], [], []>} : vector<8x8xf32>, vector<8x256xf32>, vector<8x256xf32> -> vector<8x256xf32>
    %cst_109 = arith.constant 0.000000e+00 : f32
    %188 = vector.broadcast %cst_109 : f32 to vector<8x256xf32>
    %189 = arith.maximumf %187, %188 : vector<8x256xf32>
    %c0_110 = arith.constant 0 : index
    %c0_111 = arith.constant 0 : index
    %190 = vector.load %arg9[%c0_110, %c0_111] : memref<1x8xf32, #tpu.memory_space<vmem>>, vector<1x8xf32>
    %cst_112 = arith.constant dense<0.000000e+00> : vector<1x256xf32>
    %191 = tpu.matmul %190, %189, %cst_112 {dimension_numbers = #tpu.dot_dimension_numbers<[1], [0], [0], [1], [0, 0, 1, 1], [], []>} : vector<1x8xf32>, vector<8x256xf32>, vector<1x256xf32> -> vector<1x256xf32>
    %192 = arith.negf %191 : vector<1x256xf32>
    %193 = math.exp %192 : vector<1x256xf32>
    %cst_113 = arith.constant 1.000000e+00 : f32
    %194 = vector.broadcast %cst_113 : f32 to vector<1x256xf32>
    %195 = arith.addf %194, %193 : vector<1x256xf32>
    %196 = arith.divf %194, %195 : vector<1x256xf32>
    %c0_114 = arith.constant 0 : index
    %c0_115 = arith.constant 0 : index
    %197 = vector.load %arg10[%c0_114, %c0_115] : memref<4x8xf32, #tpu.memory_space<vmem>>, vector<4x8xf32>
    %198 = vector.broadcast %196 : vector<1x256xf32> to vector<8x256xf32>
    %199 = arith.mulf %93, %198 : vector<8x256xf32>
    %cst_116 = arith.constant dense<0.000000e+00> : vector<4x256xf32>
    %200 = tpu.matmul %197, %199, %cst_116 {dimension_numbers = #tpu.dot_dimension_numbers<[1], [0], [0], [1], [0, 0, 1, 1], [], []>} : vector<4x8xf32>, vector<8x256xf32>, vector<4x256xf32> -> vector<4x256xf32>
    %c0_117 = arith.constant 0 : index
    %c0_118 = arith.constant 0 : index
    %201 = vector.load %arg11[%c0_117, %c0_118] : memref<4x1xf32, #tpu.memory_space<vmem>>, vector<4x1xf32>
    %202 = vector.broadcast %201 : vector<4x1xf32> to vector<4x256xf32>
    %203 = arith.mulf %200, %202 : vector<4x256xf32>
    %c0_119 = arith.constant 0 : index
    %c0_120 = arith.constant 0 : index
    %204 = vector.load %arg12[%c0_119, %c0_120] : memref<4x1xf32, #tpu.memory_space<vmem>>, vector<4x1xf32>
    %205 = vector.broadcast %204 : vector<4x1xf32> to vector<4x256xf32>
    %206 = arith.addf %203, %205 : vector<4x256xf32>
    %207 = arith.addf %77, %206 : vector<4x256xf32>
    %c0_121 = arith.constant 0 : index
    %c0_122 = arith.constant 0 : index
    %c0_123 = arith.constant 0 : index
    %208 = vector.load %arg13[%c0_121, %c0_122, %c0_123] : memref<1x4x256xf32, #tpu.memory_space<vmem>>, vector<1x4x256xf32>
    %209 = vector.shape_cast %208 : vector<1x4x256xf32> to vector<4x256xf32>
    %210 = vector.shape_cast %207 : vector<4x256xf32> to vector<1x4x256xf32>
    tpu.vector_store %arg13[%c0_121, %c0_122, %c0_123], %210 {strides = array<i32>} : memref<1x4x256xf32, #tpu.memory_space<vmem>>, vector<1x4x256xf32>,
    return
  }
  func.func @transform_0(%arg0: i32) -> (i32, i32, i32) {
    %c0_i32 = arith.constant 0 : i32
    %c0_i32_0 = arith.constant 0 : i32
    %c0_i32_1 = arith.constant 0 : i32
    return %arg0, %c0_i32, %c0_i32_0 : i32, i32, i32
  }
  func.func @transform_1(%arg0: i32) -> (i32, i32) {
    %c0_i32 = arith.constant 0 : i32
    %c0_i32_0 = arith.constant 0 : i32
    %c0_i32_1 = arith.constant 0 : i32
    return %c0_i32, %c0_i32_0 : i32, i32
  }
  func.func @transform_2(%arg0: i32) -> (i32, i32) {
    %c0_i32 = arith.constant 0 : i32
    %c0_i32_0 = arith.constant 0 : i32
    %c0_i32_1 = arith.constant 0 : i32
    return %c0_i32, %c0_i32_0 : i32, i32
  }
  func.func @transform_3(%arg0: i32) -> (i32, i32) {
    %c0_i32 = arith.constant 0 : i32
    %c0_i32_0 = arith.constant 0 : i32
    %c0_i32_1 = arith.constant 0 : i32
    return %c0_i32, %c0_i32_0 : i32, i32
  }
  func.func @transform_4(%arg0: i32) -> (i32, i32) {
    %c0_i32 = arith.constant 0 : i32
    %c0_i32_0 = arith.constant 0 : i32
    %c0_i32_1 = arith.constant 0 : i32
    return %c0_i32, %c0_i32_0 : i32, i32
  }
  func.func @transform_5(%arg0: i32) -> (i32, i32) {
    %c0_i32 = arith.constant 0 : i32
    %c0_i32_0 = arith.constant 0 : i32
    %c0_i32_1 = arith.constant 0 : i32
    return %c0_i32, %c0_i32_0 : i32, i32
  }
  func.func @transform_6(%arg0: i32) -> (i32, i32) {
    %c0_i32 = arith.constant 0 : i32
    %c0_i32_0 = arith.constant 0 : i32
    %c0_i32_1 = arith.constant 0 : i32
    return %c0_i32, %c0_i32_0 : i32, i32
  }
  func.func @transform_7(%arg0: i32) -> (i32, i32) {
    %c0_i32 = arith.constant 0 : i32
    %c0_i32_0 = arith.constant 0 : i32
    %c0_i32_1 = arith.constant 0 : i32
    return %c0_i32, %c0_i32_0 : i32, i32
  }
  func.func @transform_8(%arg0: i32) -> (i32, i32) {
    %c0_i32 = arith.constant 0 : i32
    %c0_i32_0 = arith.constant 0 : i32
    %c0_i32_1 = arith.constant 0 : i32
    return %c0_i32, %c0_i32_0 : i32, i32
  }
  func.func @transform_9(%arg0: i32) -> (i32, i32) {
    %c0_i32 = arith.constant 0 : i32
    %c0_i32_0 = arith.constant 0 : i32
    %c0_i32_1 = arith.constant 0 : i32
    return %c0_i32, %c0_i32_0 : i32, i32
  }
  func.func @transform_10(%arg0: i32) -> (i32, i32) {
    %c0_i32 = arith.constant 0 : i32
    %c0_i32_0 = arith.constant 0 : i32
    %c0_i32_1 = arith.constant 0 : i32
    return %c0_i32, %c0_i32_0 : i32, i32
  }
  func.func @transform_11(%arg0: i32) -> (i32, i32) {
    %c0_i32 = arith.constant 0 : i32
    %c0_i32_0 = arith.constant 0 : i32
    %c0_i32_1 = arith.constant 0 : i32
    return %c0_i32, %c0_i32_0 : i32, i32
  }
  func.func @transform_12(%arg0: i32) -> (i32, i32, i32) {
    %c0_i32 = arith.constant 0 : i32
    %c0_i32_0 = arith.constant 0 : i32
    %c0_i32_1 = arith.constant 0 : i32
    return %arg0, %c0_i32, %c0_i32_0 : i32, i32, i32
  }
}

</mosaic_0001>

<llo_original>
// kernel: tpu_custom_call.1
$region0: #{tpu_custom_call.1}
  #allocation0 [shape = 'u32[]', space=smem, size = 0x4, offset = 0x4, fixed_abs, tag = 'smem constant byte address 0x4 - core index']
  #allocation1 [shape = 'u32[144,128]{1,0:T(1,128)}', space=vmem, size = 0x12000, scoped, tag = 'internal scratch']
  #allocation2 [shape = 'f32[1,358]{1,0:T(1,128)}', space=vmem, size = 0x600, scoped, tag = 'scratch operand']
  %s0 = inlined_call_operand.vmem [shape: f32[2,4,256], index: 0, kind: input, shape index: {}]
  %s1 = inlined_call_operand.vmem [shape: f32[8,4], index: 1, kind: input, shape index: {}]
  %s2 = inlined_call_operand.vmem [shape: f32[8,1], index: 2, kind: input, shape index: {}]
  %s3 = inlined_call_operand.vmem [shape: f32[8,1], index: 3, kind: input, shape index: {}]
  %s4 = inlined_call_operand.vmem [shape: f32[8,56], index: 4, kind: input, shape index: {}]
  %s5 = inlined_call_operand.vmem [shape: f32[8,1], index: 5, kind: input, shape index: {}]
  %s6 = inlined_call_operand.vmem [shape: f32[8,1], index: 6, kind: input, shape index: {}]
  %s7 = inlined_call_operand.vmem [shape: f32[8,8], index: 7, kind: input, shape index: {}]
  %s8 = inlined_call_operand.vmem [shape: f32[1,8], index: 8, kind: input, shape index: {}]
  %s9 = inlined_call_operand.vmem [shape: f32[4,8], index: 9, kind: input, shape index: {}]
  %s10 = inlined_call_operand.vmem [shape: f32[4,1], index: 10, kind: input, shape index: {}]
  %s11 = inlined_call_operand.vmem [shape: f32[4,1], index: 11, kind: input, shape index: {}]
  %s12 = inlined_call_operand.hbm [shape: f32[2,4,256], index: 12, kind: output, shape index: {}]
  %s13 = sld [smem:[#allocation0]]
  $region81: #{tpu_custom_call.1} parent=0
    _
  %s15 = ssub.s32 1, %s13
  %s16 = scalar_select 0, %s15, %s13
  $region1: #{tpu_custom_call.1} parent=0
    #allocation3 [shape = 'u8[8192]{0}', space=vmem, size = 0x2000, scoped, tag = 'output window, operand 0']
    #allocation4 [shape = 's32[2]{0}', space=sflag, size = 0x8, scoped, tag = 'scoped memory for tpu_custom_call.1']
    %17 = vsyncpa [#allocation4], 0
    %s18 = scalar_lea.sflag [#allocation4], 1
    %19 = vsyncpa %s18, 0
    loop: start=0, step=1, limit=4
    $region2: #{tpu_custom_call.1} parent=1 // loop_pre_header
      _
    $region3: #{tpu_custom_call.1} parent=1 // loop_header
      %s21 = sphi 0, %s25
      %p22 = scmp.ge.s32.totalorder %s21, 4
      %s31 = sphi 0, %s33
      %s34 = sphi 0, %s31
      %s35 = sphi 0, %s34
      %s51 = sphi 0, %s35
      %s55 = sphi 0, %s55
      %s57 = sphi 0, %s55
      %s58 = sphi 0, %s57
      %s72 = sphi 0, %s58
      %s76 = sphi 0, %s76
      %s78 = sphi 0, %s76
      %s79 = sphi 0, %s78
      %s93 = sphi 0, %s79
      %s97 = sphi 0, %s97
      %s99 = sphi 0, %s97
      %s100 = sphi 0, %s99
      %s114 = sphi 0, %s100
      %s118 = sphi 0, %s118
      %s120 = sphi 0, %s118
      %s121 = sphi 0, %s120
      %s135 = sphi 0, %s121
      %s139 = sphi 0, %s139
      %s141 = sphi 0, %s139
      %s142 = sphi 0, %s141
      %s156 = sphi 0, %s142
      %s160 = sphi 0, %s160
      %s162 = sphi 0, %s160
      %s163 = sphi 0, %s162
      %s177 = sphi 0, %s163
      %s181 = sphi 0, %s181
      %s183 = sphi 0, %s181
      %s184 = sphi 0, %s183
      %s198 = sphi 0, %s184
      %s202 = sphi 0, %s202
      %s204 = sphi 0, %s202
      %s205 = sphi 0, %s204
      %s219 = sphi 0, %s205
      %s223 = sphi 0, %s223
      %s225 = sphi 0, %s223
      %s226 = sphi 0, %s225
      %s240 = sphi 0, %s226
      %s244 = sphi 0, %s244
      %s246 = sphi 0, %s244
      %s247 = sphi 0, %s246
      %s261 = sphi 0, %s247
      %s265 = sphi 0, %s265
      %s267 = sphi 0, %s265
      %s268 = sphi 0, %s267
      %s282 = sphi 0, %s268
      %s288 = sphi 0, %s290
      %s291 = sphi 0, %s288
      %s292 = sphi 0, %s291
      %s308 = sphi 0, %s292
    $region4: #{tpu_custom_call.1} parent=1 // loop_header_branch
      %24 = sbr.rel (%p22) target = $region8
    $region5: #{tpu_custom_call.1} parent=1 // loop_body
      %s26 = ssub.s32 %s21, 1
      %s27 = ssub.s32 %s21, 2
      %s28 = sadd.s32 %s21, 1
      %s29 = ssub.s32 %s21, %s28
      %p30 = scmp.eq.s32.totalorder %s29, 0
      %s32 = sadd.s32 %s31, 1
      %s33 = scalar_select %p30, %s31, %s32
      %p36 = pneg %p30
      %p37 = scmp.eq.s32.totalorder %s21, 1
      %p38 = por %p36, %p37
      %p39 = scmp.ne.s32.totalorder %s31, %s34
      %p40 = scmp.eq.s32.totalorder %s21, 0
      %p41 = por %p39, %p40
      %p42 = scmp.ne.s32.totalorder %s31, %s34
      %p43 = scmp.eq.s32.totalorder %s26, 1
      %p44 = por %p42, %p43
      %p45 = scmp.ne.s32.totalorder %s34, %s35
      %p46 = scmp.eq.s32.totalorder %s26, 0
      %p47 = por %p45, %p46
      %p48 = scmp.ne.s32.totalorder %s34, %s35
      %p49 = scmp.eq.s32.totalorder %s27, 1
      %p50 = por %p48, %p49
      %p52 = scmp.ne.s32.totalorder %s35, %s51
      %p53 = scmp.eq.s32.totalorder %s27, 0
      %p54 = por %p52, %p53
      %s56 = sadd.s32 %s55, 1
      %p59 = scmp.eq.s32.totalorder %s21, 1
      %p60 = scmp.ne.s32.totalorder %s55, %s57
      %p61 = scmp.eq.s32.totalorder %s21, 0
      %p62 = por %p60, %p61
      %p63 = scmp.ne.s32.totalorder %s55, %s57
      %p64 = scmp.eq.s32.totalorder %s26, 1
      %p65 = por %p63, %p64
      %p66 = scmp.ne.s32.totalorder %s57, %s58
      %p67 = scmp.eq.s32.totalorder %s26, 0
      %p68 = por %p66, %p67
      %p69 = scmp.ne.s32.totalorder %s57, %s58
      %p70 = scmp.eq.s32.totalorder %s27, 1
      %p71 = por %p69, %p70
      %p73 = scmp.ne.s32.totalorder %s58, %s72
      %p74 = scmp.eq.s32.totalorder %s27, 0
      %p75 = por %p73, %p74
      %s77 = sadd.s32 %s76, 1
      %p80 = scmp.eq.s32.totalorder %s21, 1
      %p81 = scmp.ne.s32.totalorder %s76, %s78
      %p82 = scmp.eq.s32.totalorder %s21, 0
      %p83 = por %p81, %p82
      %p84 = scmp.ne.s32.totalorder %s76, %s78
      %p85 = scmp.eq.s32.totalorder %s26, 1
      %p86 = por %p84, %p85
      %p87 = scmp.ne.s32.totalorder %s78, %s79
      %p88 = scmp.eq.s32.totalorder %s26, 0
      %p89 = por %p87, %p88
      %p90 = scmp.ne.s32.totalorder %s78, %s79
      %p91 = scmp.eq.s32.totalorder %s27, 1
      %p92 = por %p90, %p91
      %p94 = scmp.ne.s32.totalorder %s79, %s93
      %p95 = scmp.eq.s32.totalorder %s27, 0
      %p96 = por %p94, %p95
      %s98 = sadd.s32 %s97, 1
      %p101 = scmp.eq.s32.totalorder %s21, 1
      %p102 = scmp.ne.s32.totalorder %s97, %s99
      %p103 = scmp.eq.s32.totalorder %s21, 0
      %p104 = por %p102, %p103
      %p105 = scmp.ne.s32.totalorder %s97, %s99
      %p106 = scmp.eq.s32.totalorder %s26, 1
      %p107 = por %p105, %p106
      %p108 = scmp.ne.s32.totalorder %s99, %s100
      %p109 = scmp.eq.s32.totalorder %s26, 0
      %p110 = por %p108, %p109
      %p111 = scmp.ne.s32.totalorder %s99, %s100
      %p112 = scmp.eq.s32.totalorder %s27, 1
      %p113 = por %p111, %p112
      %p115 = scmp.ne.s32.totalorder %s100, %s114
      %p116 = scmp.eq.s32.totalorder %s27, 0
      %p117 = por %p115, %p116
      %s119 = sadd.s32 %s118, 1
      %p122 = scmp.eq.s32.totalorder %s21, 1
      %p123 = scmp.ne.s32.totalorder %s118, %s120
      %p124 = scmp.eq.s32.totalorder %s21, 0
      %p125 = por %p123, %p124
      %p126 = scmp.ne.s32.totalorder %s118, %s120
      %p127 = scmp.eq.s32.totalorder %s26, 1
      %p128 = por %p126, %p127
      %p129 = scmp.ne.s32.totalorder %s120, %s121
      %p130 = scmp.eq.s32.totalorder %s26, 0
      %p131 = por %p129, %p130
      %p132 = scmp.ne.s32.totalorder %s120, %s121
      %p133 = scmp.eq.s32.totalorder %s27, 1
      %p134 = por %p132, %p133
      %p136 = scmp.ne.s32.totalorder %s121, %s135
      %p137 = scmp.eq.s32.totalorder %s27, 0
      %p138 = por %p136, %p137
      %s140 = sadd.s32 %s139, 1
      %p143 = scmp.eq.s32.totalorder %s21, 1
      %p144 = scmp.ne.s32.totalorder %s139, %s141
      %p145 = scmp.eq.s32.totalorder %s21, 0
      %p146 = por %p144, %p145
      %p147 = scmp.ne.s32.totalorder %s139, %s141
      %p148 = scmp.eq.s32.totalorder %s26, 1
      %p149 = por %p147, %p148
      %p150 = scmp.ne.s32.totalorder %s141, %s142
      %p151 = scmp.eq.s32.totalorder %s26, 0
      %p152 = por %p150, %p151
      %p153 = scmp.ne.s32.totalorder %s141, %s142
      %p154 = scmp.eq.s32.totalorder %s27, 1
      %p155 = por %p153, %p154
      %p157 = scmp.ne.s32.totalorder %s142, %s156
      %p158 = scmp.eq.s32.totalorder %s27, 0
      %p159 = por %p157, %p158
      %s161 = sadd.s32 %s160, 1
      %p164 = scmp.eq.s32.totalorder %s21, 1
      %p165 = scmp.ne.s32.totalorder %s160, %s162
      %p166 = scmp.eq.s32.totalorder %s21, 0
      %p167 = por %p165, %p166
      %p168 = scmp.ne.s32.totalorder %s160, %s162
      %p169 = scmp.eq.s32.totalorder %s26, 1
      %p170 = por %p168, %p169
      %p171 = scmp.ne.s32.totalorder %s162, %s163
      %p172 = scmp.eq.s32.totalorder %s26, 0
      %p173 = por %p171, %p172
      %p174 = scmp.ne.s32.totalorder %s162, %s163
      %p175 = scmp.eq.s32.totalorder %s27, 1
      %p176 = por %p174, %p175
      %p178 = scmp.ne.s32.totalorder %s163, %s177
      %p179 = scmp.eq.s32.totalorder %s27, 0
      %p180 = por %p178, %p179
      %s182 = sadd.s32 %s181, 1
      %p185 = scmp.eq.s32.totalorder %s21, 1
      %p186 = scmp.ne.s32.totalorder %s181, %s183
      %p187 = scmp.eq.s32.totalorder %s21, 0
      %p188 = por %p186, %p187
      %p189 = scmp.ne.s32.totalorder %s181, %s183
      %p190 = scmp.eq.s32.totalorder %s26, 1
      %p191 = por %p189, %p190
      %p192 = scmp.ne.s32.totalorder %s183, %s184
      %p193 = scmp.eq.s32.totalorder %s26, 0
      %p194 = por %p192, %p193
      %p195 = scmp.ne.s32.totalorder %s183, %s184
      %p196 = scmp.eq.s32.totalorder %s27, 1
      %p197 = por %p195, %p196
      %p199 = scmp.ne.s32.totalorder %s184, %s198
      %p200 = scmp.eq.s32.totalorder %s27, 0
      %p201 = por %p199, %p200
      %s203 = sadd.s32 %s202, 1
      %p206 = scmp.eq.s32.totalorder %s21, 1
      %p207 = scmp.ne.s32.totalorder %s202, %s204
      %p208 = scmp.eq.s32.totalorder %s21, 0
      %p209 = por %p207, %p208
      %p210 = scmp.ne.s32.totalorder %s202, %s204
      %p211 = scmp.eq.s32.totalorder %s26, 1
      %p212 = por %p210, %p211
      %p213 = scmp.ne.s32.totalorder %s204, %s205
      %p214 = scmp.eq.s32.totalorder %s26, 0
      %p215 = por %p213, %p214
      %p216 = scmp.ne.s32.totalorder %s204, %s205
      %p217 = scmp.eq.s32.totalorder %s27, 1
      %p218 = por %p216, %p217
      %p220 = scmp.ne.s32.totalorder %s205, %s219
      %p221 = scmp.eq.s32.totalorder %s27, 0
      %p222 = por %p220, %p221
      %s224 = sadd.s32 %s223, 1
      %p227 = scmp.eq.s32.totalorder %s21, 1
      %p228 = scmp.ne.s32.totalorder %s223, %s225
      %p229 = scmp.eq.s32.totalorder %s21, 0
      %p230 = por %p228, %p229
      %p231 = scmp.ne.s32.totalorder %s223, %s225
      %p232 = scmp.eq.s32.totalorder %s26, 1
      %p233 = por %p231, %p232
      %p234 = scmp.ne.s32.totalorder %s225, %s226
      %p235 = scmp.eq.s32.totalorder %s26, 0
      %p236 = por %p234, %p235
      %p237 = scmp.ne.s32.totalorder %s225, %s226
      %p238 = scmp.eq.s32.totalorder %s27, 1
      %p239 = por %p237, %p238
      %p241 = scmp.ne.s32.totalorder %s226, %s240
      %p242 = scmp.eq.s32.totalorder %s27, 0
      %p243 = por %p241, %p242
      %s245 = sadd.s32 %s244, 1
      %p248 = scmp.eq.s32.totalorder %s21, 1
      %p249 = scmp.ne.s32.totalorder %s244, %s246
      %p250 = scmp.eq.s32.totalorder %s21, 0
      %p251 = por %p249, %p250
      %p252 = scmp.ne.s32.totalorder %s244, %s246
      %p253 = scmp.eq.s32.totalorder %s26, 1
      %p254 = por %p252, %p253
      %p255 = scmp.ne.s32.totalorder %s246, %s247
      %p256 = scmp.eq.s32.totalorder %s26, 0
      %p257 = por %p255, %p256
      %p258 = scmp.ne.s32.totalorder %s246, %s247
      %p259 = scmp.eq.s32.totalorder %s27, 1
      %p260 = por %p258, %p259
      %p262 = scmp.ne.s32.totalorder %s247, %s261
      %p263 = scmp.eq.s32.totalorder %s27, 0
      %p264 = por %p262, %p263
      %s266 = sadd.s32 %s265, 1
      %p269 = scmp.eq.s32.totalorder %s21, 1
      %p270 = scmp.ne.s32.totalorder %s265, %s267
      %p271 = scmp.eq.s32.totalorder %s21, 0
      %p272 = por %p270, %p271
      %p273 = scmp.ne.s32.totalorder %s265, %s267
      %p274 = scmp.eq.s32.totalorder %s26, 1
      %p275 = por %p273, %p274
      %p276 = scmp.ne.s32.totalorder %s267, %s268
      %p277 = scmp.eq.s32.totalorder %s26, 0
      %p278 = por %p276, %p277
      %p279 = scmp.ne.s32.totalorder %s267, %s268
      %p280 = scmp.eq.s32.totalorder %s27, 1
      %p281 = por %p279, %p280
      %p283 = scmp.ne.s32.totalorder %s268, %s282
      %p284 = scmp.eq.s32.totalorder %s27, 0
      %p285 = por %p283, %p284
      %s286 = ssub.s32 %s21, %s28
      %p287 = scmp.eq.s32.totalorder %s286, 0
      %s289 = sadd.s32 %s288, 1
      %s290 = scalar_select %p287, %s288, %s289
      %p293 = pneg %p287
      %p294 = scmp.eq.s32.totalorder %s21, 1
      %p295 = por %p293, %p294
      %p296 = scmp.ne.s32.totalorder %s288, %s291
      %p297 = scmp.eq.s32.totalorder %s21, 0
      %p298 = por %p296, %p297
      %p299 = scmp.ne.s32.totalorder %s288, %s291
      %p300 = scmp.eq.s32.totalorder %s26, 1
      %p301 = por %p299, %p300
      %p302 = scmp.ne.s32.totalorder %s291, %s292
      %p303 = scmp.eq.s32.totalorder %s26, 0
      %p304 = por %p302, %p303
      %p305 = scmp.ne.s32.totalorder %s291, %s292
      %p306 = scmp.eq.s32.totalorder %s27, 1
      %p307 = por %p305, %p306
      %p309 = scmp.ne.s32.totalorder %s292, %s308
      %p310 = scmp.eq.s32.totalorder %s27, 0
      %p311 = por %p309, %p310
      %p312 = scmp.le.s32.totalorder 1, %s21
      %p313 = scmp.lt.s32.totalorder %s21, 3
      %p314 = pnand %p312, %p313
      %p315 = pneg %p314
      // Predicated region
      $region9: #{tpu_custom_call.1} parent=5 // pred_check
        _
      $region10: #{tpu_custom_call.1} parent=5 // pred_check_branch
        %317 = sbr.rel (%p314) target = $region12
      $region11: #{tpu_custom_call.1} parent=5 // pred_region
        %s318 = ssub.s32 %s21, 1
        // Predicated region
        $region13: #{tpu_custom_call.1} parent=11 // pred_check
          %p319 = pneg %p68
        $region14: #{tpu_custom_call.1} parent=11 // pred_check_branch
          %321 = sbr.rel (%p319) target = $region16
        $region15: #{tpu_custom_call.1} parent=11 // pred_region
          _
        $region16: #{tpu_custom_call.1} parent=11 // pred_fallthru
          _
        // Predicated region
        $region17: #{tpu_custom_call.1} parent=11 // pred_check
          %p322 = pneg %p89
        $region18: #{tpu_custom_call.1} parent=11 // pred_check_branch
          %324 = sbr.rel (%p322) target = $region20
        $region19: #{tpu_custom_call.1} parent=11 // pred_region
          _
        $region20: #{tpu_custom_call.1} parent=11 // pred_fallthru
          _
        // Predicated region
        $region21: #{tpu_custom_call.1} parent=11 // pred_check
          %p325 = pneg %p110
        $region22: #{tpu_custom_call.1} parent=11 // pred_check_branch
          %327 = sbr.rel (%p325) target = $region24
        $region23: #{tpu_custom_call.1} parent=11 // pred_region
          _
        $region24: #{tpu_custom_call.1} parent=11 // pred_fallthru
          _
        // Predicated region
        $region25: #{tpu_custom_call.1} parent=11 // pred_check
          %p328 = pneg %p131
        $region26: #{tpu_custom_call.1} parent=11 // pred_check_branch
          %330 = sbr.rel (%p328) target = $region28
        $region27: #{tpu_custom_call.1} parent=11 // pred_region
          _
        $region28: #{tpu_custom_call.1} parent=11 // pred_fallthru
          _
        // Predicated region
        $region29: #{tpu_custom_call.1} parent=11 // pred_check
          %p331 = pneg %p152
        $region30: #{tpu_custom_call.1} parent=11 // pred_check_branch
          %333 = sbr.rel (%p331) target = $region32
        $region31: #{tpu_custom_call.1} parent=11 // pred_region
          _
        $region32: #{tpu_custom_call.1} parent=11 // pred_fallthru
          _
        // Predicated region
        $region33: #{tpu_custom_call.1} parent=11 // pred_check
          %p334 = pneg %p173
        $region34: #{tpu_custom_call.1} parent=11 // pred_check_branch
          %336 = sbr.rel (%p334) target = $region36
        $region35: #{tpu_custom_call.1} parent=11 // pred_region
          _
        $region36: #{tpu_custom_call.1} parent=11 // pred_fallthru
          _
        // Predicated region
        $region37: #{tpu_custom_call.1} parent=11 // pred_check
          %p337 = pneg %p194
        $region38: #{tpu_custom_call.1} parent=11 // pred_check_branch
          %339 = sbr.rel (%p337) target = $region40
        $region39: #{tpu_custom_call.1} parent=11 // pred_region
          _
        $region40: #{tpu_custom_call.1} parent=11 // pred_fallthru
          _
        // Predicated region
        $region41: #{tpu_custom_call.1} parent=11 // pred_check
          %p340 = pneg %p215
        $region42: #{tpu_custom_call.1} parent=11 // pred_check_branch
          %342 = sbr.rel (%p340) target = $region44
        $region43: #{tpu_custom_call.1} parent=11 // pred_region
          _
        $region44: #{tpu_custom_call.1} parent=11 // pred_fallthru
          _
        // Predicated region
        $region45: #{tpu_custom_call.1} parent=11 // pred_check
          %p343 = pneg %p236
        $region46: #{tpu_custom_call.1} parent=11 // pred_check_branch
          %345 = sbr.rel (%p343) target = $region48
        $region47: #{tpu_custom_call.1} parent=11 // pred_region
          _
        $region48: #{tpu_custom_call.1} parent=11 // pred_fallthru
          _
        // Predicated region
        $region49: #{tpu_custom_call.1} parent=11 // pred_check
          %p346 = pneg %p257
        $region50: #{tpu_custom_call.1} parent=11 // pred_check_branch
          %348 = sbr.rel (%p346) target = $region52
        $region51: #{tpu_custom_call.1} parent=11 // pred_region
          _
        $region52: #{tpu_custom_call.1} parent=11 // pred_fallthru
          _
        // Predicated region
        $region53: #{tpu_custom_call.1} parent=11 // pred_check
          %p349 = pneg %p278
        $region54: #{tpu_custom_call.1} parent=11 // pred_check_branch
          %351 = sbr.rel (%p349) target = $region56
        $region55: #{tpu_custom_call.1} parent=11 // pred_region
          _
        $region56: #{tpu_custom_call.1} parent=11 // pred_fallthru
          _
      $region12: #{tpu_custom_call.1} parent=5 // pred_fallthru
        _
      %p352 = scmp.lt.s32.totalorder %s21, 2
      // Predicated region
      $region57: #{tpu_custom_call.1} parent=5 // pred_check
        %p353 = pneg %p352
      $region58: #{tpu_custom_call.1} parent=5 // pred_check_branch
        %355 = sbr.rel (%p353) target = $region60
      $region59: #{tpu_custom_call.1} parent=5 // pred_region
        // Predicated region
        $region61: #{tpu_custom_call.1} parent=59 // pred_check
          %p356 = pneg %p41
        $region62: #{tpu_custom_call.1} parent=59 // pred_check_branch
          %358 = sbr.rel (%p356) target = $region64
        $region63: #{tpu_custom_call.1} parent=59 // pred_region
          %p359 = scmp.lt.s32.totalorder %s21, 1
          %s360 = scalar_select %p359, %s21, 1
          %s361 = smul.addr %s360, 2
          %s362 = smul.addr %s361, 4
          %s363 = scalar_lea.vmem %s0, %s362
        $region64: #{tpu_custom_call.1} parent=59 // pred_fallthru
          _
      $region60: #{tpu_custom_call.1} parent=5 // pred_fallthru
        _
      %p364 = scmp.le.s32.totalorder 1, %s21
      %p365 = scmp.lt.s32.totalorder %s21, 3
      %p366 = pnand %p364, %p365
      %p367 = pneg %p366
      // Predicated region
      $region65: #{tpu_custom_call.1} parent=5 // pred_check
        _
      $region66: #{tpu_custom_call.1} parent=5 // pred_check_branch
        %369 = sbr.rel (%p366) target = $region68
      $region67: #{tpu_custom_call.1} parent=5 // pred_region
        %s370 = ssub.s32 %s21, 1
        %p371 = scmp.lt.s32.totalorder %s26, 1
        %s372 = scalar_select %p371, %s26, 1
        %s373 = smul.addr %s372, 2
        %s374 = smul.addr %s373, 4
        %s375 = scalar_lea.vmem %s0, %s374
        %p376 = pneg %p47
        %p377 = pneg %p44
        %p378 = pneg %p68
        %p379 = pneg %p65
        %p380 = pneg %p89
        %p381 = pneg %p86
        %p382 = pneg %p110
        %p383 = pneg %p107
        %p384 = pneg %p131
        %p385 = pneg %p128
        %p386 = pneg %p152
        %p387 = pneg %p149
        %p388 = pneg %p173
        %p389 = pneg %p170
        %p390 = pneg %p194
        %p391 = pneg %p191
        %p392 = pneg %p215
        %p393 = pneg %p212
        %p394 = pneg %p236
        %p395 = pneg %p233
        %p396 = pneg %p257
        %p397 = pneg %p254
        %p398 = pneg %p278
        %p399 = pneg %p275
        %p400 = pneg %p304
        %p401 = pneg %p301
        %s402 = sand.u32 %s291, 1
        %s403 = scalar_lea.sflag [#allocation4], %s402
        %s404 = sand.u32 %s291, 1
        %s405 = smul.addr %s404, 8
        %s406 = scalar_lea.vmem [#allocation3], %s405
        %p407 = scmp.lt.s32.totalorder %s26, 1
        %s408 = scalar_select %p407, %s26, 1
        %s409 = smul.addr %s408, 2
        %s410 = smul.addr %s409, 4
        %s411 = scalar_lea.vmem %s0, %s410
        %v412 = vlaneseq
        %v413 = vand.u32 %v412, 127
        %v414 = vadd.s32 %v413, 128
        %vm415 = vcmp.lt.s32.totalorder %v413, 0
        %v416 = vsub.s32 0, %v413
        %v417 = vsel %vm415, %v416, %v413
        %v418 = vshrl.u32 %v417, 4
        %v419 = vand.u32 %v417, 15
        %v420 = vsub.s32 0, %v419
        %v421 = vsel %vm415, %v420, %v419
        %vm422 = vcmp.lt.s32.totalorder %v414, 0
        %v423 = vsub.s32 0, %v414
        %v424 = vsel %vm422, %v423, %v414
        %v425 = vshrl.u32 %v424, 4
        %v426 = vand.u32 %v424, 15
        %v427 = vsub.s32 0, %v426
        %v428 = vsel %vm422, %v427, %v426
        %vm429 = vcmp.ne.s32.totalorder %v421, 0
        %vm430 = vcmp.ne.s32.totalorder %v428, 0
        %vm431 = vcmp.lt.s32.totalorder %v421, 0
        %vm432 = vcmp.lt.s32.totalorder %v428, 0
        %vm433 = vmand %vm431, %vm429
        %vm434 = vmand %vm432, %vm430
        %v435 = vadd.s32 %v421, 16
        %v436 = vadd.s32 %v428, 16
        %v437 = vsel %vm433, %v435, %v421
        %v438 = vsel %vm434, %v436, %v428
        %v439 = vadd.s32 %v437, 4294967293
        %v440 = vadd.s32 %v438, 4294967293
        %vm441 = vcmp.ge.s32.totalorder %v439, 0
        %vm442 = vcmp.ge.s32.totalorder %v440, 0
        %vm443 = vcmp.lt.s32.totalorder %v439, 16
        %vm444 = vcmp.lt.s32.totalorder %v440, 16
        %vm445 = vmand %vm441, %vm443
        %vm446 = vmand %vm442, %vm444
        %v447 = vadd.s32 %v437, 4294967294
        %v448 = vadd.s32 %v438, 4294967294
        %vm449 = vcmp.ge.s32.totalorder %v447, 0
        %vm450 = vcmp.ge.s32.totalorder %v448, 0
        %vm451 = vcmp.lt.s32.totalorder %v447, 16
        %vm452 = vcmp.lt.s32.totalorder %v448, 16
        %vm453 = vmand %vm449, %vm451
        %vm454 = vmand %vm450, %vm452
        %v455 = vadd.s32 %v437, 4294967295
        %v456 = vadd.s32 %v438, 4294967295
        %vm457 = vcmp.ge.s32.totalorder %v455, 0
        %vm458 = vcmp.ge.s32.totalorder %v456, 0
        %vm459 = vcmp.lt.s32.totalorder %v455, 16
        %vm460 = vcmp.lt.s32.totalorder %v456, 16
        %vm461 = vmand %vm457, %vm459
        %vm462 = vmand %vm458, %vm460
        %v463 = vadd.s32 %v437, 1
        %v464 = vadd.s32 %v438, 1
        %vm465 = vcmp.ge.s32.totalorder %v463, 0
        %vm466 = vcmp.ge.s32.totalorder %v464, 0
        %vm467 = vcmp.lt.s32.totalorder %v463, 16
        %vm468 = vcmp.lt.s32.totalorder %v464, 16
        %vm469 = vmand %vm465, %vm467
        %vm470 = vmand %vm466, %vm468
        %v471 = vadd.s32 %v437, 2
        %v472 = vadd.s32 %v438, 2
        %vm473 = vcmp.ge.s32.totalorder %v471, 0
        %vm474 = vcmp.ge.s32.totalorder %v472, 0
        %vm475 = vcmp.lt.s32.totalorder %v471, 16
        %vm476 = vcmp.lt.s32.totalorder %v472, 16
        %vm477 = vmand %vm473, %vm475
        %vm478 = vmand %vm474, %vm476
        %v479 = vadd.s32 %v437, 3
        %v480 = vadd.s32 %v438, 3
        %vm481 = vcmp.ge.s32.totalorder %v479, 0
        %vm482 = vcmp.ge.s32.totalorder %v480, 0
        %vm483 = vcmp.lt.s32.totalorder %v479, 16
        %vm484 = vcmp.lt.s32.totalorder %v480, 16
        %vm485 = vmand %vm481, %vm483
        %vm486 = vmand %vm482, %vm484
        %v487 = vlaneseq
        %vm488 = vcmp.ge.s32.totalorder %v487, 0
        %vm489 = vcmp.lt.s32.totalorder %v487, 51
        %vm490 = vmand %vm488, %vm489
        %491 = vst.msk [vmem:[#allocation2] sm:$0x1] %vm490, 0.0
        %vm492 = vcmp.ge.s32.totalorder %v487, 51
        %vm493 = vcmp.lt.s32.totalorder %v487, 102
        %vm494 = vmand %vm492, %vm493
        %495 = vst.msk [vmem:[#allocation2 + $0x2] sm:$0x1] %vm494, 0.0
        %v496 = vld [vmem:[%s411] sm:$0xff]
        %v497 = vld [vmem:[%s1] sm:$0xff]
        %v499 = vcombine.high %v496, %v496
        %vm500 = vcmask 31744
        %v502 = vsel %vm500, %v497, 0
        %vm504 = vcmask 1043456
        %v505 = vsel %vm504, %v496, 0
        %v507 = vsel %vm504, %v499, 0
        %509 = vmatprep.subr.mxu0 %v507
        %510 = vmatpush1.msra.mxu0 %v505
        %511 = vmatprep.subr.mxu0 0.0
        %512 = vmatpush1.msra.mxu0 0.0
        %513 = vmatprep.subr.mxu0 0.0
        %514 = vmatpush1.msra.mxu0 0.0
        %515 = vmatprep.subr.mxu0 0.0
        %516 = vmatpush1.msra.mxu0 0.0
        %517 = vmatprep.subr.mxu0 0.0
        %518 = vmatpush1.msra.mxu0 0.0
        %519 = vmatprep.subr.mxu0 0.0
        %520 = vmatpush1.msra.mxu0 0.0
        %521 = vmatprep.subr.mxu0 0.0
        %522 = vmatpush1.msra.mxu0 0.0
        %523 = vmatprep.subr.mxu0 0.0
        %524 = vmatpush1.msra.mxu0 0.0
        %525 = vmatprep.subr.mxu0 0.0
        %526 = vmatpush1.msra.mxu0 0.0
        %527 = vmatprep.subr.mxu0 0.0
        %528 = vmatpush1.msra.mxu0 0.0
        %529 = vmatprep.subr.mxu0 0.0
        %530 = vmatpush1.msra.mxu0 0.0
        %531 = vmatprep.subr.mxu0 0.0
        %532 = vmatpush1.msra.mxu0 0.0
        %533 = vmatprep.subr.mxu0 0.0
        %534 = vmatpush1.msra.mxu0 0.0
        %535 = vmatprep.subr.mxu0 0.0
        %536 = vmatpush1.msra.mxu0 0.0
        %537 = vmatprep.subr.mxu0 0.0
        %538 = vmatpush1.msra.mxu0 0.0
        %539 = vmatprep.subr.mxu0 0.0
        %540 = vmatpush1.msra.mxu0 0.0
        %541 = vmatprep.subr.mxu0 0.0
        %542 = vmatpush1.msra.mxu0 0.0
        %543 = vmatprep.subr.mxu0 0.0
        %544 = vmatpush1.msra.mxu0 0.0
        %545 = vmatprep.subr.mxu0 0.0
        %546 = vmatpush1.msra.mxu0 0.0
        %547 = vmatprep.subr.mxu0 0.0
        %548 = vmatpush1.msra.mxu0 0.0
        %549 = vmatprep.subr.mxu0 0.0
        %550 = vmatpush1.msra.mxu0 0.0
        %551 = vmatprep.subr.mxu0 0.0
        %552 = vmatpush1.msra.mxu0 0.0
        %553 = vmatprep.subr.mxu0 0.0
        %554 = vmatpush1.msra.mxu0 0.0
        %555 = vmatprep.subr.mxu0 0.0
        %556 = vmatpush1.msra.mxu0 0.0
        %557 = vmatprep.subr.mxu0 0.0
        %558 = vmatpush1.msra.mxu0 0.0
        %559 = vmatprep.subr.mxu0 0.0
        %560 = vmatpush1.msra.mxu0 0.0
        %561 = vmatprep.subr.mxu0 0.0
        %562 = vmatpush1.msra.mxu0 0.0
        %563 = vmatprep.subr.mxu0 0.0
        %564 = vmatpush1.msra.mxu0 0.0
        %565 = vmatprep.subr.mxu0 0.0
        %566 = vmatpush1.msra.mxu0 0.0
        %567 = vmatprep.subr.mxu0 0.0
        %568 = vmatpush1.msra.mxu0 0.0
        %569 = vmatprep.subr.mxu0 0.0
        %570 = vmatpush1.msra.mxu0 0.0
        %571 = vmatprep.subr.mxu0 0.0
        %572 = vmatpush1.msra.mxu0 0.0
        %573 = vmatprep.mubr.f32.mxu0 0.0
        %574 = vmatmul.mubr.f32.gmra.mrb[0].mxu0 %v502
        %v575 = vpop.f32.mrb[0].mxu0
        %v576 = vadd.f32 0.0, %v575
        %v577 = vpop.f32.mrb[0].mxu0
        %v578 = vadd.f32 0.0, %v577
        %579 = vdwg.mxu0
        %v580 = vld [vmem:[%s2] sm:$0xff]
        %582 = vset.pattern.permute.xlu0 0
        %583 = vperm.xlu0 %582, %v580
        %v584 = vpop.permute.xlu0 %583
        %v586 = vmul.f32 %v576, %v584
        %v587 = vmul.f32 %v578, %v584
        %v588 = vld [vmem:[%s3] sm:$0xff]
        %590 = vset.pattern.permute.xlu0 0
        %591 = vperm.xlu0 %590, %v588
        %v592 = vpop.permute.xlu0 %591
        %v594 = vadd.f32 %v586, %v592
        %v595 = vadd.f32 %v587, %v592
        %v596 = vmul.f32 %v594, 0.5
        %v597 = vmul.f32 %v595, 0.5
        %v598 = vmul.f32 %v594, 0.70710677
        %v599 = vmul.f32 %v595, 0.70710677
        %v600 = verf.f32.pop %v598
        %v601 = verf.f32.pop %v599
        %v602 = vadd.f32 %v600, 1.0
        %v603 = vadd.f32 %v601, 1.0
        %v604 = vmul.f32 %v596, %v602
        %v605 = vmul.f32 %v597, %v603
        %vm606 = vcmask 64512
        %v608 = vsel %vm606, 0.125, 0
        %610 = vmatprep.subr.mxu0 %v605
        %611 = vmatpush1.msra.mxu0 %v604
        %612 = vmatprep.subr.mxu0 0.0
        %613 = vmatpush1.msra.mxu0 0.0
        %614 = vmatprep.subr.mxu0 0.0
        %615 = vmatpush1.msra.mxu0 0.0
        %616 = vmatprep.subr.mxu0 0.0
        %617 = vmatpush1.msra.mxu0 0.0
        %618 = vmatprep.subr.mxu0 0.0
        %619 = vmatpush1.msra.mxu0 0.0
        %620 = vmatprep.subr.mxu0 0.0
        %621 = vmatpush1.msra.mxu0 0.0
        %622 = vmatprep.subr.mxu0 0.0
        %623 = vmatpush1.msra.mxu0 0.0
        %624 = vmatprep.subr.mxu0 0.0
        %625 = vmatpush1.msra.mxu0 0.0
        %626 = vmatprep.subr.mxu0 0.0
        %627 = vmatpush1.msra.mxu0 0.0
        %628 = vmatprep.subr.mxu0 0.0
        %629 = vmatpush1.msra.mxu0 0.0
        %630 = vmatprep.subr.mxu0 0.0
        %631 = vmatpush1.msra.mxu0 0.0
        %632 = vmatprep.subr.mxu0 0.0
        %633 = vmatpush1.msra.mxu0 0.0
        %634 = vmatprep.subr.mxu0 0.0
        %635 = vmatpush1.msra.mxu0 0.0
        %636 = vmatprep.subr.mxu0 0.0
        %637 = vmatpush1.msra.mxu0 0.0
        %638 = vmatprep.subr.mxu0 0.0
        %639 = vmatpush1.msra.mxu0 0.0
        %640 = vmatprep.subr.mxu0 0.0
        %641 = vmatpush1.msra.mxu0 0.0
        %642 = vmatprep.subr.mxu0 0.0
        %643 = vmatpush1.msra.mxu0 0.0
        %644 = vmatprep.subr.mxu0 0.0
        %645 = vmatpush1.msra.mxu0 0.0
        %646 = vmatprep.subr.mxu0 0.0
        %647 = vmatpush1.msra.mxu0 0.0
        %648 = vmatprep.subr.mxu0 0.0
        %649 = vmatpush1.msra.mxu0 0.0
        %650 = vmatprep.subr.mxu0 0.0
        %651 = vmatpush1.msra.mxu0 0.0
        %652 = vmatprep.subr.mxu0 0.0
        %653 = vmatpush1.msra.mxu0 0.0
        %654 = vmatprep.subr.mxu0 0.0
        %655 = vmatpush1.msra.mxu0 0.0
        %656 = vmatprep.subr.mxu0 0.0
        %657 = vmatpush1.msra.mxu0 0.0
        %658 = vmatprep.subr.mxu0 0.0
        %659 = vmatpush1.msra.mxu0 0.0
        %660 = vmatprep.subr.mxu0 0.0
        %661 = vmatpush1.msra.mxu0 0.0
        %662 = vmatprep.subr.mxu0 0.0
        %663 = vmatpush1.msra.mxu0 0.0
        %664 = vmatprep.subr.mxu0 0.0
        %665 = vmatpush1.msra.mxu0 0.0
        %666 = vmatprep.subr.mxu0 0.0
        %667 = vmatpush1.msra.mxu0 0.0
        %668 = vmatprep.subr.mxu0 0.0
        %669 = vmatpush1.msra.mxu0 0.0
        %670 = vmatprep.subr.mxu0 0.0
        %671 = vmatpush1.msra.mxu0 0.0
        %672 = vmatprep.subr.mxu0 0.0
        %673 = vmatpush1.msra.mxu0 0.0
        %674 = vmatprep.mubr.f32.mxu0 0.0
        %675 = vmatmul.mubr.f32.gmra.mrb[0].mxu0 %v608
        %v676 = vpop.f32.mrb[0].mxu0
        %v677 = vadd.f32 0.0, %v676
        %v678 = vpop.f32.mrb[0].mxu0
        %v679 = vadd.f32 0.0, %v678
        %680 = vdwg.mxu0
        %v683 = vcombine.low %v677, %v679
        %v685 = vunpack.c.l.s4 1966171168
        %v686 = vunpack.c.0.s8 %v685
        %v687 = vlaneseq
        %v688 = vshrl.u32 %v687, 7
        %v689 = vsub.s32 %v686, %v688
        %v690 = vrot.slane %v683, %v689
        %v692 = vunpack.c.l.s4 1966171168
        %v693 = vunpack.c.0.s8 %v692
        %v694 = vlaneseq
        %v695 = vshrl.u32 %v694, 7
        %v696 = vsub.s32 %v693, %v695
        %v697 = vrot.slane %v690, %v696
        %698 = vrot.lane.b32.xlu0 %v697, 51
        %v699 = vpop.permute.xlu0 %698
        %v700 = vrot.slane %v699, 7
        %vm701 = vcmask 416768
        %v702 = vsel %vm701, %v700, %v699
        %vm704 = vcmp.lt.s32.totalorder %v487, 307
        %vm705 = vmand %vm492, %vm704
        %706 = vst.msk [vmem:[#allocation2] sm:$0x7] %vm705, %v702
        %v707 = vld [vmem:[#allocation2] sm:$0x3]
        %v708 = vld [vmem:[#allocation2] sm:$0x7]
        %v710 = vlaneseq
        %v711 = vshrl.u32 %v710, 7
        %v712 = vsub.s32 0, %v711
        %v713 = vrot.slane %v707, %v712
        %v714 = vlaneseq
        %v715 = vshrl.u32 %v714, 7
        %v716 = vsub.s32 1, %v715
        %v717 = vrot.slane %v707, %v716
        %v721 = vlaneseq
        %v722 = vshrl.u32 %v721, 7
        %v723 = vsub.s32 0, %v722
        %v724 = vrot.slane %v708, %v723
        %v725 = vlaneseq
        %v726 = vshrl.u32 %v725, 7
        %v727 = vsub.s32 1, %v726
        %v728 = vrot.slane %v708, %v727
        %v729 = vlaneseq
        %v730 = vshrl.u32 %v729, 7
        %v731 = vsub.s32 2, %v730
        %v732 = vrot.slane %v708, %v731
        %733 = vrot.lane.b32.xlu0 %v724, 112
        %v734 = vpop.permute.xlu0 %733
        %735 = vrot.lane.b32.xlu0 %v728, 112
        %v736 = vpop.permute.xlu0 %735
        %737 = vrot.lane.b32.xlu0 %v732, 112
        %v738 = vpop.permute.xlu0 %737
        %vm739 = vcmask 916480
        %v740 = vsel %vm739, %v734, %v736
        %v741 = vsel %vm739, %v736, %v738
        %744 = vrot.lane.b32.xlu0 %v724, 96
        %v745 = vpop.permute.xlu0 %744
        %746 = vrot.lane.b32.xlu0 %v728, 96
        %v747 = vpop.permute.xlu0 %746
        %748 = vrot.lane.b32.xlu0 %v732, 96
        %v749 = vpop.permute.xlu0 %748
        %vm750 = vcmask 785408
        %v751 = vsel %vm750, %v745, %v747
        %v752 = vsel %vm750, %v747, %v749
        %755 = vrot.lane.b32.xlu0 %v724, 80
        %v756 = vpop.permute.xlu0 %755
        %757 = vrot.lane.b32.xlu0 %v728, 80
        %v758 = vpop.permute.xlu0 %757
        %759 = vrot.lane.b32.xlu0 %v732, 80
        %v760 = vpop.permute.xlu0 %759
        %vm761 = vcmask 654336
        %v762 = vsel %vm761, %v756, %v758
        %v763 = vsel %vm761, %v758, %v760
        %766 = vrot.lane.b32.xlu0 %v724, 64
        %v767 = vpop.permute.xlu0 %766
        %768 = vrot.lane.b32.xlu0 %v728, 64
        %v769 = vpop.permute.xlu0 %768
        %770 = vrot.lane.b32.xlu0 %v732, 64
        %v771 = vpop.permute.xlu0 %770
        %vm772 = vcmask 523264
        %v773 = vsel %vm772, %v767, %v769
        %v774 = vsel %vm772, %v769, %v771
        %777 = vrot.lane.b32.xlu0 %v724, 48
        %v778 = vpop.permute.xlu0 %777
        %779 = vrot.lane.b32.xlu0 %v728, 48
        %v780 = vpop.permute.xlu0 %779
        %781 = vrot.lane.b32.xlu0 %v732, 48
        %v782 = vpop.permute.xlu0 %781
        %vm783 = vcmask 392192
        %v784 = vsel %vm783, %v778, %v780
        %v785 = vsel %vm783, %v780, %v782
        %788 = vrot.lane.b32.xlu0 %v724, 32
        %v789 = vpop.permute.xlu0 %788
        %790 = vrot.lane.b32.xlu0 %v728, 32
        %v791 = vpop.permute.xlu0 %790
        %792 = vrot.lane.b32.xlu0 %v732, 32
        %v793 = vpop.permute.xlu0 %792
        %vm794 = vcmask 261120
        %v795 = vsel %vm794, %v789, %v791
        %v796 = vsel %vm794, %v791, %v793
        %vm799 = vcmask 1040384
        %v800 = vsel %vm799, %v713, %v740
        %v801 = vsel %vm799, %v717, %v741
        %vm802 = vcmask 1041408
        %v803 = vsel %vm802, %v800, %v751
        %v804 = vsel %vm802, %v801, %v752
        %vm805 = vcmask 1042432
        %v806 = vsel %vm805, %v803, %v762
        %v807 = vsel %vm805, %v804, %v763
        %v808 = vsel %vm504, %v806, %v773
        %v809 = vsel %vm504, %v807, %v774
        %vm810 = vcmask 1044480
        %v811 = vsel %vm810, %v808, %v784
        %v812 = vsel %vm810, %v809, %v785
        %vm813 = vcmask 1045504
        %v814 = vsel %vm813, %v811, %v795
        %v815 = vsel %vm813, %v812, %v796
        %v816 = vsel %vm445, 1, 0
        %v817 = vsel %vm446, 1, 0
        %vm818 = vcmp.eq.s32.totalorder %v816, 1
        %vm819 = vcmp.eq.s32.totalorder %v817, 1
        %v820 = vsel %vm818, %v814, 0.0
        %v821 = vsel %vm819, %v815, 0.0
        %v831 = vsel %vm799, %v724, %v740
        %v832 = vsel %vm799, %v728, %v741
        %v833 = vsel %vm799, %v732, %v738
        %v834 = vsel %vm802, %v831, %v751
        %v835 = vsel %vm802, %v832, %v752
        %v836 = vsel %vm802, %v833, %v749
        %v837 = vsel %vm805, %v834, %v762
        %v838 = vsel %vm805, %v835, %v763
        %v839 = vsel %vm805, %v836, %v760
        %v840 = vsel %vm504, %v837, %v773
        %v841 = vsel %vm504, %v838, %v774
        %v842 = vsel %vm504, %v839, %v771
        %v843 = vsel %vm810, %v840, %v784
        %v844 = vsel %vm810, %v841, %v785
        %v845 = vsel %vm810, %v842, %v782
        %v846 = vsel %vm813, %v843, %v795
        %v847 = vsel %vm813, %v844, %v796
        %v848 = vsel %vm813, %v845, %v793
        %v849 = vsel %vm453, 1, 0
        %v850 = vsel %vm454, 1, 0
        %vm851 = vcmp.eq.s32.totalorder %v849, 1
        %vm852 = vcmp.eq.s32.totalorder %v850, 1
        %856 = vrot.lane.b32.xlu0 %v846, 127
        %v857 = vpop.permute.xlu0 %856
        %858 = vrot.lane.b32.xlu0 %v847, 127
        %v859 = vpop.permute.xlu0 %858
        %860 = vrot.lane.b32.xlu0 %v848, 127
        %v861 = vpop.permute.xlu0 %860
        %vm862 = vcmask 1039360
        %v863 = vsel %vm862, %v857, %v859
        %v864 = vsel %vm862, %v859, %v861
        %v867 = vsel %vm851, %v863, 0.0
        %v868 = vsel %vm852, %v864, 0.0
        %v869 = vsel %vm461, 1, 0
        %v870 = vsel %vm462, 1, 0
        %vm871 = vcmp.eq.s32.totalorder %v869, 1
        %vm872 = vcmp.eq.s32.totalorder %v870, 1
        %873 = vrot.lane.b32.xlu0 %v846, 126
        %v874 = vpop.permute.xlu0 %873
        %875 = vrot.lane.b32.xlu0 %v847, 126
        %v876 = vpop.permute.xlu0 %875
        %877 = vrot.lane.b32.xlu0 %v848, 126
        %v878 = vpop.permute.xlu0 %877
        %vm879 = vcmask 1031168
        %v880 = vsel %vm879, %v874, %v876
        %v881 = vsel %vm879, %v876, %v878
        %v884 = vsel %vm871, %v880, 0.0
        %v885 = vsel %vm872, %v881, 0.0
        %v886 = vsel %vm469, 1, 0
        %v887 = vsel %vm470, 1, 0
        %vm888 = vcmp.eq.s32.totalorder %v886, 1
        %vm889 = vcmp.eq.s32.totalorder %v887, 1
        %890 = vrot.lane.b32.xlu0 %v846, 124
        %v891 = vpop.permute.xlu0 %890
        %892 = vrot.lane.b32.xlu0 %v847, 124
        %v893 = vpop.permute.xlu0 %892
        %894 = vrot.lane.b32.xlu0 %v848, 124
        %v895 = vpop.permute.xlu0 %894
        %vm896 = vcmask 1014784
        %v897 = vsel %vm896, %v891, %v893
        %v898 = vsel %vm896, %v893, %v895
        %v901 = vsel %vm888, %v897, 0.0
        %v902 = vsel %vm889, %v898, 0.0
        %v903 = vsel %vm477, 1, 0
        %v904 = vsel %vm478, 1, 0
        %vm905 = vcmp.eq.s32.totalorder %v903, 1
        %vm906 = vcmp.eq.s32.totalorder %v904, 1
        %907 = vrot.lane.b32.xlu0 %v846, 123
        %v908 = vpop.permute.xlu0 %907
        %909 = vrot.lane.b32.xlu0 %v847, 123
        %v910 = vpop.permute.xlu0 %909
        %911 = vrot.lane.b32.xlu0 %v848, 123
        %v912 = vpop.permute.xlu0 %911
        %vm913 = vcmask 1006592
        %v914 = vsel %vm913, %v908, %v910
        %v915 = vsel %vm913, %v910, %v912
        %v918 = vsel %vm905, %v914, 0.0
        %v919 = vsel %vm906, %v915, 0.0
        %v920 = vsel %vm485, 1, 0
        %v921 = vsel %vm486, 1, 0
        %vm922 = vcmp.eq.s32.totalorder %v920, 1
        %vm923 = vcmp.eq.s32.totalorder %v921, 1
        %924 = vrot.lane.b32.xlu0 %v846, 122
        %v925 = vpop.permute.xlu0 %924
        %926 = vrot.lane.b32.xlu0 %v847, 122
        %v927 = vpop.permute.xlu0 %926
        %928 = vrot.lane.b32.xlu0 %v848, 122
        %v929 = vpop.permute.xlu0 %928
        %vm930 = vcmask 998400
        %v931 = vsel %vm930, %v925, %v927
        %v932 = vsel %vm930, %v927, %v929
        %v935 = vsel %vm922, %v931, 0.0
        %v936 = vsel %vm923, %v932, 0.0
        %v939 = vrot.slane %v867, 1
        %v940 = vrot.slane %v868, 1
        %v945 = vrot.slane %v884, 2
        %v946 = vrot.slane %v885, 2
        %v949 = vrot.slane %v846, 3
        %v950 = vrot.slane %v847, 3
        %v951 = vrot.slane %v848, 3
        %952 = vrot.lane.b32.xlu0 %v949, 125
        %v953 = vpop.permute.xlu0 %952
        %954 = vrot.lane.b32.xlu0 %v950, 125
        %v955 = vpop.permute.xlu0 %954
        %956 = vrot.lane.b32.xlu0 %v951, 125
        %v957 = vpop.permute.xlu0 %956
        %vm958 = vcmask 1022976
        %v959 = vsel %vm958, %v953, %v955
        %v960 = vsel %vm958, %v955, %v957
        %v965 = vrot.slane %v901, 4
        %v966 = vrot.slane %v902, 4
        %v971 = vrot.slane %v918, 5
        %v972 = vrot.slane %v919, 5
        %v977 = vrot.slane %v935, 6
        %v978 = vrot.slane %v936, 6
        %vm981 = vcmask 1046528
        %v982 = vsel %vm981, %v820, %v939
        %v983 = vsel %vm981, %v821, %v940
        %v984 = vsel %vm813, %v939, %v945
        %v985 = vsel %vm813, %v940, %v946
        %v986 = vsel %vm810, %v945, %v959
        %v987 = vsel %vm810, %v946, %v960
        %v988 = vsel %vm504, %v959, %v965
        %v989 = vsel %vm504, %v960, %v966
        %v990 = vsel %vm805, %v965, %v971
        %v991 = vsel %vm805, %v966, %v972
        %v992 = vsel %vm802, %v971, %v977
        %v993 = vsel %vm802, %v972, %v978
        %v994 = vsel %vm799, %v977, 0.0
        %v995 = vsel %vm799, %v978, 0.0
        %v996 = vld [vmem:[%s4] sm:$0xff]
        %vm997 = vcmask 457728
        %v999 = vsel %vm997, %v996, 0
        %1001 = vmatprep.subr.mxu0 %v983
        %1002 = vmatpush1.msra.mxu0 %v982
        %1003 = vmatprep.subr.mxu0 %v985
        %1004 = vmatpush1.msra.mxu0 %v984
        %1005 = vmatprep.subr.mxu0 %v987
        %1006 = vmatpush1.msra.mxu0 %v986
        %1007 = vmatprep.subr.mxu0 %v989
        %1008 = vmatpush1.msra.mxu0 %v988
        %1009 = vmatprep.subr.mxu0 %v991
        %1010 = vmatpush1.msra.mxu0 %v990
        %1011 = vmatprep.subr.mxu0 %v993
        %1012 = vmatpush1.msra.mxu0 %v992
        %1013 = vmatprep.subr.mxu0 %v995
        %1014 = vmatpush1.msra.mxu0 %v994
        %1015 = vmatprep.subr.mxu0 0.0
        %1016 = vmatpush1.msra.mxu0 0.0
        %1017 = vmatprep.subr.mxu0 0.0
        %1018 = vmatpush1.msra.mxu0 0.0
        %1019 = vmatprep.subr.mxu0 0.0
        %1020 = vmatpush1.msra.mxu0 0.0
        %1021 = vmatprep.subr.mxu0 0.0
        %1022 = vmatpush1.msra.mxu0 0.0
        %1023 = vmatprep.subr.mxu0 0.0
        %1024 = vmatpush1.msra.mxu0 0.0
        %1025 = vmatprep.subr.mxu0 0.0
        %1026 = vmatpush1.msra.mxu0 0.0
        %1027 = vmatprep.subr.mxu0 0.0
        %1028 = vmatpush1.msra.mxu0 0.0
        %1029 = vmatprep.subr.mxu0 0.0
        %1030 = vmatpush1.msra.mxu0 0.0
        %1031 = vmatprep.subr.mxu0 0.0
        %1032 = vmatpush1.msra.mxu0 0.0
        %1033 = vmatprep.subr.mxu0 0.0
        %1034 = vmatpush1.msra.mxu0 0.0
        %1035 = vmatprep.subr.mxu0 0.0
        %1036 = vmatpush1.msra.mxu0 0.0
        %1037 = vmatprep.subr.mxu0 0.0
        %1038 = vmatpush1.msra.mxu0 0.0
        %1039 = vmatprep.subr.mxu0 0.0
        %1040 = vmatpush1.msra.mxu0 0.0
        %1041 = vmatprep.subr.mxu0 0.0
        %1042 = vmatpush1.msra.mxu0 0.0
        %1043 = vmatprep.subr.mxu0 0.0
        %1044 = vmatpush1.msra.mxu0 0.0
        %1045 = vmatprep.subr.mxu0 0.0
        %1046 = vmatpush1.msra.mxu0 0.0
        %1047 = vmatprep.subr.mxu0 0.0
        %1048 = vmatpush1.msra.mxu0 0.0
        %1049 = vmatprep.subr.mxu0 0.0
        %1050 = vmatpush1.msra.mxu0 0.0
        %1051 = vmatprep.subr.mxu0 0.0
        %1052 = vmatpush1.msra.mxu0 0.0
        %1053 = vmatprep.subr.mxu0 0.0
        %1054 = vmatpush1.msra.mxu0 0.0
        %1055 = vmatprep.subr.mxu0 0.0
        %1056 = vmatpush1.msra.mxu0 0.0
        %1057 = vmatprep.subr.mxu0 0.0
        %1058 = vmatpush1.msra.mxu0 0.0
        %1059 = vmatprep.subr.mxu0 0.0
        %1060 = vmatpush1.msra.mxu0 0.0
        %1061 = vmatprep.subr.mxu0 0.0
        %1062 = vmatpush1.msra.mxu0 0.0
        %1063 = vmatprep.subr.mxu0 0.0
        %1064 = vmatpush1.msra.mxu0 0.0
        %1065 = vmatprep.mubr.f32.mxu0 0.0
        %1066 = vmatmul.mubr.f32.gmra.mrb[0].mxu0 %v999
        %v1067 = vpop.f32.mrb[0].mxu0
        %v1068 = vadd.f32 0.0, %v1067
        %v1069 = vpop.f32.mrb[0].mxu0
        %v1070 = vadd.f32 0.0, %v1069
        %1071 = vdwg.mxu0
        %v1072 = vld [vmem:[%s5] sm:$0xff]
        %1074 = vset.pattern.permute.xlu0 0
        %1075 = vperm.xlu0 %1074, %v1072
        %v1076 = vpop.permute.xlu0 %1075
        %v1078 = vmul.f32 %v1068, %v1076
        %v1079 = vmul.f32 %v1070, %v1076
        %v1080 = vld [vmem:[%s6] sm:$0xff]
        %1082 = vset.pattern.permute.xlu0 0
        %1083 = vperm.xlu0 %1082, %v1080
        %v1084 = vpop.permute.xlu0 %1083
        %v1086 = vadd.f32 %v1078, %v1084
        %v1087 = vadd.f32 %v1079, %v1084
        %v1088 = vld [vmem:[%s7] sm:$0xff]
        %v1090 = vsel %vm606, %v1088, 0
        %1092 = vmatprep.subr.mxu0 %v1087
        %1093 = vmatpush1.msra.mxu0 %v1086
        %1094 = vmatprep.subr.mxu0 0.0
        %1095 = vmatpush1.msra.mxu0 0.0
        %1096 = vmatprep.subr.mxu0 0.0
        %1097 = vmatpush1.msra.mxu0 0.0
        %1098 = vmatprep.subr.mxu0 0.0
        %1099 = vmatpush1.msra.mxu0 0.0
        %1100 = vmatprep.subr.mxu0 0.0
        %1101 = vmatpush1.msra.mxu0 0.0
        %1102 = vmatprep.subr.mxu0 0.0
        %1103 = vmatpush1.msra.mxu0 0.0
        %1104 = vmatprep.subr.mxu0 0.0
        %1105 = vmatpush1.msra.mxu0 0.0
        %1106 = vmatprep.subr.mxu0 0.0
        %1107 = vmatpush1.msra.mxu0 0.0
        %1108 = vmatprep.subr.mxu0 0.0
        %1109 = vmatpush1.msra.mxu0 0.0
        %1110 = vmatprep.subr.mxu0 0.0
        %1111 = vmatpush1.msra.mxu0 0.0
        %1112 = vmatprep.subr.mxu0 0.0
        %1113 = vmatpush1.msra.mxu0 0.0
        %1114 = vmatprep.subr.mxu0 0.0
        %1115 = vmatpush1.msra.mxu0 0.0
        %1116 = vmatprep.subr.mxu0 0.0
        %1117 = vmatpush1.msra.mxu0 0.0
        %1118 = vmatprep.subr.mxu0 0.0
        %1119 = vmatpush1.msra.mxu0 0.0
        %1120 = vmatprep.subr.mxu0 0.0
        %1121 = vmatpush1.msra.mxu0 0.0
        %1122 = vmatprep.subr.mxu0 0.0
        %1123 = vmatpush1.msra.mxu0 0.0
        %1124 = vmatprep.subr.mxu0 0.0
        %1125 = vmatpush1.msra.mxu0 0.0
        %1126 = vmatprep.subr.mxu0 0.0
        %1127 = vmatpush1.msra.mxu0 0.0
        %1128 = vmatprep.subr.mxu0 0.0
        %1129 = vmatpush1.msra.mxu0 0.0
        %1130 = vmatprep.subr.mxu0 0.0
        %1131 = vmatpush1.msra.mxu0 0.0
        %1132 = vmatprep.subr.mxu0 0.0
        %1133 = vmatpush1.msra.mxu0 0.0
        %1134 = vmatprep.subr.mxu0 0.0
        %1135 = vmatpush1.msra.mxu0 0.0
        %1136 = vmatprep.subr.mxu0 0.0
        %1137 = vmatpush1.msra.mxu0 0.0
        %1138 = vmatprep.subr.mxu0 0.0
        %1139 = vmatpush1.msra.mxu0 0.0
        %1140 = vmatprep.subr.mxu0 0.0
        %1141 = vmatpush1.msra.mxu0 0.0
        %1142 = vmatprep.subr.mxu0 0.0
        %1143 = vmatpush1.msra.mxu0 0.0
        %1144 = vmatprep.subr.mxu0 0.0
        %1145 = vmatpush1.msra.mxu0 0.0
        %1146 = vmatprep.subr.mxu0 0.0
        %1147 = vmatpush1.msra.mxu0 0.0
        %1148 = vmatprep.subr.mxu0 0.0
        %1149 = vmatpush1.msra.mxu0 0.0
        %1150 = vmatprep.subr.mxu0 0.0
        %1151 = vmatpush1.msra.mxu0 0.0
        %1152 = vmatprep.subr.mxu0 0.0
        %1153 = vmatpush1.msra.mxu0 0.0
        %1154 = vmatprep.subr.mxu0 0.0
        %1155 = vmatpush1.msra.mxu0 0.0
        %1156 = vmatprep.mubr.f32.mxu0 0.0
        %1157 = vmatmul.mubr.f32.gmra.mrb[0].mxu0 %v1090
        %v1158 = vpop.f32.mrb[0].mxu0
        %v1159 = vadd.f32 0.0, %v1158
        %v1160 = vpop.f32.mrb[0].mxu0
        %v1161 = vadd.f32 0.0, %v1160
        %1162 = vdwg.mxu0
        %v1163 = vmax.f32 %v1159, 0.0
        %v1164 = vmax.f32 %v1161, 0.0
        %v1165 = vld [vmem:[%s8] sm:$0x1]
        %v1167 = vsel %vm606, %v1165, 0
        %1169 = vmatprep.subr.mxu0 %v1164
        %1170 = vmatpush1.msra.mxu0 %v1163
        %1171 = vmatprep.subr.mxu0 0.0
        %1172 = vmatpush1.msra.mxu0 0.0
        %1173 = vmatprep.subr.mxu0 0.0
        %1174 = vmatpush1.msra.mxu0 0.0
        %1175 = vmatprep.subr.mxu0 0.0
        %1176 = vmatpush1.msra.mxu0 0.0
        %1177 = vmatprep.subr.mxu0 0.0
        %1178 = vmatpush1.msra.mxu0 0.0
        %1179 = vmatprep.subr.mxu0 0.0
        %1180 = vmatpush1.msra.mxu0 0.0
        %1181 = vmatprep.subr.mxu0 0.0
        %1182 = vmatpush1.msra.mxu0 0.0
        %1183 = vmatprep.subr.mxu0 0.0
        %1184 = vmatpush1.msra.mxu0 0.0
        %1185 = vmatprep.subr.mxu0 0.0
        %1186 = vmatpush1.msra.mxu0 0.0
        %1187 = vmatprep.subr.mxu0 0.0
        %1188 = vmatpush1.msra.mxu0 0.0
        %1189 = vmatprep.subr.mxu0 0.0
        %1190 = vmatpush1.msra.mxu0 0.0
        %1191 = vmatprep.subr.mxu0 0.0
        %1192 = vmatpush1.msra.mxu0 0.0
        %1193 = vmatprep.subr.mxu0 0.0
        %1194 = vmatpush1.msra.mxu0 0.0
        %1195 = vmatprep.subr.mxu0 0.0
        %1196 = vmatpush1.msra.mxu0 0.0
        %1197 = vmatprep.subr.mxu0 0.0
        %1198 = vmatpush1.msra.mxu0 0.0
        %1199 = vmatprep.subr.mxu0 0.0
        %1200 = vmatpush1.msra.mxu0 0.0
        %1201 = vmatprep.subr.mxu0 0.0
        %1202 = vmatpush1.msra.mxu0 0.0
        %1203 = vmatprep.subr.mxu0 0.0
        %1204 = vmatpush1.msra.mxu0 0.0
        %1205 = vmatprep.subr.mxu0 0.0
        %1206 = vmatpush1.msra.mxu0 0.0
        %1207 = vmatprep.subr.mxu0 0.0
        %1208 = vmatpush1.msra.mxu0 0.0
        %1209 = vmatprep.subr.mxu0 0.0
        %1210 = vmatpush1.msra.mxu0 0.0
        %1211 = vmatprep.subr.mxu0 0.0
        %1212 = vmatpush1.msra.mxu0 0.0
        %1213 = vmatprep.subr.mxu0 0.0
        %1214 = vmatpush1.msra.mxu0 0.0
        %1215 = vmatprep.subr.mxu0 0.0
        %1216 = vmatpush1.msra.mxu0 0.0
        %1217 = vmatprep.subr.mxu0 0.0
        %1218 = vmatpush1.msra.mxu0 0.0
        %1219 = vmatprep.subr.mxu0 0.0
        %1220 = vmatpush1.msra.mxu0 0.0
        %1221 = vmatprep.subr.mxu0 0.0
        %1222 = vmatpush1.msra.mxu0 0.0
        %1223 = vmatprep.subr.mxu0 0.0
        %1224 = vmatpush1.msra.mxu0 0.0
        %1225 = vmatprep.subr.mxu0 0.0
        %1226 = vmatpush1.msra.mxu0 0.0
        %1227 = vmatprep.subr.mxu0 0.0
        %1228 = vmatpush1.msra.mxu0 0.0
        %1229 = vmatprep.subr.mxu0 0.0
        %1230 = vmatpush1.msra.mxu0 0.0
        %1231 = vmatprep.subr.mxu0 0.0
        %1232 = vmatpush1.msra.mxu0 0.0
        %1233 = vmatprep.mubr.f32.mxu0 0.0
        %1234 = vmatmul.mubr.f32.gmra.mrb[0].mxu0 %v1167
        %v1235 = vpop.f32.mrb[0].mxu0
        %v1236 = vadd.f32 0.0, %v1235
        %v1237 = vpop.f32.mrb[0].mxu0
        %v1238 = vadd.f32 0.0, %v1237
        %1239 = vdwg.mxu0
        %v1240 = vxor.u32 %v1236, 2147483648
        %v1241 = vxor.u32 %v1238, 2147483648
        %v1242 = vmul.f32 %v1240, 1.442695
        %v1243 = vpow.pop %v1242
        %v1244 = vmul.f32 %v1241, 1.442695
        %v1245 = vpow.pop %v1244
        %v1246 = vadd.f32 %v1243, 1.0
        %v1247 = vadd.f32 %v1245, 1.0
        %v1248 = vrcp.pop %v1246
        %v1249 = vmul.f32 1.0, %v1248
        %v1250 = vrcp.pop %v1247
        %v1251 = vmul.f32 1.0, %v1250
        %v1252 = vld [vmem:[%s9] sm:$0xf]
        %v1253 = vlaneseq
        %v1254 = vshrl.u32 %v1253, 7
        %v1255 = vsub.s32 0, %v1254
        %v1256 = vrot.slane %v1249, %v1255
        %v1257 = vlaneseq
        %v1258 = vshrl.u32 %v1257, 7
        %v1259 = vsub.s32 0, %v1258
        %v1260 = vrot.slane %v1251, %v1259
        %v1261 = vmul.f32 %v604, %v1256
        %v1262 = vmul.f32 %v605, %v1260
        %v1264 = vsel %vm606, %v1252, 0
        %1266 = vmatprep.subr.mxu0 %v1262
        %1267 = vmatpush1.msra.mxu0 %v1261
        %1268 = vmatprep.subr.mxu0 0.0
        %1269 = vmatpush1.msra.mxu0 0.0
        %1270 = vmatprep.subr.mxu0 0.0
        %1271 = vmatpush1.msra.mxu0 0.0
        %1272 = vmatprep.subr.mxu0 0.0
        %1273 = vmatpush1.msra.mxu0 0.0
        %1274 = vmatprep.subr.mxu0 0.0
        %1275 = vmatpush1.msra.mxu0 0.0
        %1276 = vmatprep.subr.mxu0 0.0
        %1277 = vmatpush1.msra.mxu0 0.0
        %1278 = vmatprep.subr.mxu0 0.0
        %1279 = vmatpush1.msra.mxu0 0.0
        %1280 = vmatprep.subr.mxu0 0.0
        %1281 = vmatpush1.msra.mxu0 0.0
        %1282 = vmatprep.subr.mxu0 0.0
        %1283 = vmatpush1.msra.mxu0 0.0
        %1284 = vmatprep.subr.mxu0 0.0
        %1285 = vmatpush1.msra.mxu0 0.0
        %1286 = vmatprep.subr.mxu0 0.0
        %1287 = vmatpush1.msra.mxu0 0.0
        %1288 = vmatprep.subr.mxu0 0.0
        %1289 = vmatpush1.msra.mxu0 0.0
        %1290 = vmatprep.subr.mxu0 0.0
        %1291 = vmatpush1.msra.mxu0 0.0
        %1292 = vmatprep.subr.mxu0 0.0
        %1293 = vmatpush1.msra.mxu0 0.0
        %1294 = vmatprep.subr.mxu0 0.0
        %1295 = vmatpush1.msra.mxu0 0.0
        %1296 = vmatprep.subr.mxu0 0.0
        %1297 = vmatpush1.msra.mxu0 0.0
        %1298 = vmatprep.subr.mxu0 0.0
        %1299 = vmatpush1.msra.mxu0 0.0
        %1300 = vmatprep.subr.mxu0 0.0
        %1301 = vmatpush1.msra.mxu0 0.0
        %1302 = vmatprep.subr.mxu0 0.0
        %1303 = vmatpush1.msra.mxu0 0.0
        %1304 = vmatprep.subr.mxu0 0.0
        %1305 = vmatpush1.msra.mxu0 0.0
        %1306 = vmatprep.subr.mxu0 0.0
        %1307 = vmatpush1.msra.mxu0 0.0
        %1308 = vmatprep.subr.mxu0 0.0
        %1309 = vmatpush1.msra.mxu0 0.0
        %1310 = vmatprep.subr.mxu0 0.0
        %1311 = vmatpush1.msra.mxu0 0.0
        %1312 = vmatprep.subr.mxu0 0.0
        %1313 = vmatpush1.msra.mxu0 0.0
        %1314 = vmatprep.subr.mxu0 0.0
        %1315 = vmatpush1.msra.mxu0 0.0
        %1316 = vmatprep.subr.mxu0 0.0
        %1317 = vmatpush1.msra.mxu0 0.0
        %1318 = vmatprep.subr.mxu0 0.0
        %1319 = vmatpush1.msra.mxu0 0.0
        %1320 = vmatprep.subr.mxu0 0.0
        %1321 = vmatpush1.msra.mxu0 0.0
        %1322 = vmatprep.subr.mxu0 0.0
        %1323 = vmatpush1.msra.mxu0 0.0
        %1324 = vmatprep.subr.mxu0 0.0
        %1325 = vmatpush1.msra.mxu0 0.0
        %1326 = vmatprep.subr.mxu0 0.0
        %1327 = vmatpush1.msra.mxu0 0.0
        %1328 = vmatprep.subr.mxu0 0.0
        %1329 = vmatpush1.msra.mxu0 0.0
        %1330 = vmatprep.mubr.f32.mxu0 0.0
        %1331 = vmatmul.mubr.f32.gmra.mrb[0].mxu0 %v1264
        %v1332 = vpop.f32.mrb[0].mxu0
        %v1333 = vadd.f32 0.0, %v1332
        %v1334 = vpop.f32.mrb[0].mxu0
        %v1335 = vadd.f32 0.0, %v1334
        %1336 = vdwg.mxu0
        %v1337 = vld [vmem:[%s10] sm:$0xf]
        %1339 = vset.pattern.permute.xlu0 0
        %1340 = vperm.xlu0 %1339, %v1337
        %v1341 = vpop.permute.xlu0 %1340
        %v1343 = vmul.f32 %v1333, %v1341
        %v1344 = vmul.f32 %v1335, %v1341
        %v1345 = vld [vmem:[%s11] sm:$0xf]
        %1347 = vset.pattern.permute.xlu0 0
        %1348 = vperm.xlu0 %1347, %v1345
        %v1349 = vpop.permute.xlu0 %1348
        %v1351 = vadd.f32 %v1343, %v1349
        %v1352 = vadd.f32 %v1344, %v1349
        %v1355 = vcombine.low %v1351, %v1352
        %v1357 = vadd.f32 %v496, %v1355
        %1358 = vst [vmem:[%s406] sm:$0xff] %v1357
        %s1359 = sand.u32 %s291, 1
        %s1360 = scalar_lea.sflag [#allocation4], %s1359
        %s1361 = sand.u32 %s291, 1
        %s1362 = smul.addr %s1361, 8
        %s1363 = scalar_lea.vmem [#allocation3], %s1362
        // Predicated region
        $region69: #{tpu_custom_call.1} parent=67 // pred_check
          %p1364 = pneg %p301
        $region70: #{tpu_custom_call.1} parent=67 // pred_check_branch
          %1366 = sbr.rel (%p1364) target = $region72
        $region71: #{tpu_custom_call.1} parent=67 // pred_region
          %s1368 = ssub.s32 128, 128
          %1369 = vsyncadd %s1360, %s1368
          %s1370 = smul.addr %s26, 2
          %s1371 = smul.addr %s1370, 64
          %s1372 = scalar_lea.hbm %s12, %s1371
          %s1374 = sshll.u32 %s1363, 4
          %s1375 = int_to_ptr.vmem [resolvable:$true] %s1374
          %1377 = dma.vmem_to_hbm [thread:$0]  %s1375, 128, %s1372, %s1360
        $region72: #{tpu_custom_call.1} parent=67 // pred_fallthru
          _
      $region68: #{tpu_custom_call.1} parent=5 // pred_fallthru
        _
      %p1378 = scmp.le.s32.totalorder 2, %s21
      // Predicated region
      $region73: #{tpu_custom_call.1} parent=5 // pred_check
        %p1379 = pneg %p1378
      $region74: #{tpu_custom_call.1} parent=5 // pred_check_branch
        %1381 = sbr.rel (%p1379) target = $region76
      $region75: #{tpu_custom_call.1} parent=5 // pred_region
        %s1382 = ssub.s32 %s21, 2
        // Predicated region
        $region77: #{tpu_custom_call.1} parent=75 // pred_check
          %p1383 = pneg %p307
        $region78: #{tpu_custom_call.1} parent=75 // pred_check_branch
          %1385 = sbr.rel (%p1383) target = $region80
        $region79: #{tpu_custom_call.1} parent=75 // pred_region
          %s1386 = sand.u32 %s292, 1
          %s1387 = scalar_lea.sflag [#allocation4], %s1386
          %s1388 = sand.u32 %s292, 1
          %s1389 = smul.addr %s1388, 8
          %s1390 = scalar_lea.vmem [#allocation3], %s1389
          %1391 = dma.done %s1387, 128
        $region80: #{tpu_custom_call.1} parent=75 // pred_fallthru
          _
      $region76: #{tpu_custom_call.1} parent=5 // pred_fallthru
        _
    $region6: #{tpu_custom_call.1} parent=1 // loop_footer
      %s25 = sadd.s32 1, %s21
    $region7: #{tpu_custom_call.1} parent=1 // loop_footer_branch
      %20 = sbr.rel target = $region3
    $region8: #{tpu_custom_call.1} parent=1 // loop_exit
      _
    %1392 = vsyncpa [#allocation4], 1
    %s1393 = scalar_lea.sflag [#allocation4], 1
    %1394 = vsyncpa %s1393, 1

</llo_original>
